<compile_context>
chip_gen: v5e
topology: v5e:2x2
jax: 0.10.0
libtpu: 0.0.40
codegen_flags: <defaults>
</compile_context>

<pallas_src>
import functools

import numpy as np
import jax
import jax.numpy as jnp
from jax import lax
from jax.experimental import pallas as pl
from jax.experimental.pallas import tpu as pltpu


def _hausdorff_kernel(p_ref, q_ref, out_ref, *, alpha, thresh, tq, n_chunks):
    """One (batch, p-tile) grid step.

    p_ref  : (1, 8, T)      rows [x, y, g_pred, g_tgt, 1, v_pred, v_tgt, |c|^2]
    q_ref  : (1, 8, N_pad)  rows [2x, 2y, -(B/2)g_pred, -(B/2)g_tgt, -(qn+B/2), 0, 0, -1]
    out_ref: (1, 1, 1)      per-batch loss accumulator (resident across p-tiles)
    """
    j = pl.program_id(1)

    p = p_ref[0]                    # (8, T) lane-dense
    pT = p.T                        # (T, 8) — tiny XLU transpose, once per grid step
    t = pT.shape[0]

    # Both matmuls share the same RHS; select which class row (g_pred vs g_tgt)
    # participates by zeroing the other LHS column (done once, outside the q loop).
    col = lax.broadcasted_iota(jnp.int32, (t, 8), 1)
    lhs_pred = jnp.where(col == 3, 0.0, pT)
    lhs_tgt = jnp.where(col == 2, 0.0, pT)

    neg = jnp.full((t, 1), jnp.finfo(jnp.float32).min, jnp.float32)

    def chunk_max(start, acc_p, acc_t):
        # Slice the q-chunk straight out of the VMEM-resident Q block; no (T, N)
        # temporaries ever materialize.
        q_chunk = q_ref[0, :, pl.ds(start, tq)]                               # (8, tq)
        dp = jnp.dot(lhs_pred, q_chunk, preferred_element_type=jnp.float32)   # (t, tq)
        dt = jnp.dot(lhs_tgt, q_chunk, preferred_element_type=jnp.float32)    # (t, tq)
        acc_p = jnp.maximum(acc_p, jnp.max(dp, axis=1, keepdims=True))
        acc_t = jnp.maximum(acc_t, jnp.max(dt, axis=1, keepdims=True))
        return acc_p, acc_t

    if n_chunks <= 8:
        acc_p, acc_t = neg, neg
        for k in range(n_chunks):                      # static, fully unrolled
            acc_p, acc_t = chunk_max(k * tq, acc_p, acc_t)
    else:
        def body(k, carry):
            start = pl.multiple_of(k * tq, tq)         # aligned dynamic slice
            return chunk_max(start, *carry)
        acc_p, acc_t = lax.fori_loop(0, n_chunks, body, (neg, neg), unroll=2)

    # dot[p,q] = -(d2 + BIG*[same class]) (|c_p|^2 folded via LHS col 7 x Q row 7),
    # so raw = -max_q dot = min over opposite-class q of d2, or >= BIG when no
    # opposite-class pixel exists (including padded q pixels).
    raw_p = -acc_p
    raw_t = -acc_t

    if float(alpha) == 2.0:
        d_pred = jnp.where(raw_p < thresh, jnp.maximum(raw_p, 0.0), 0.0)
        d_tgt = jnp.where(raw_t < thresh, jnp.maximum(raw_t, 0.0), 0.0)
        dist = d_pred + d_tgt
    else:
        f_pred = jnp.where(raw_p < thresh, jnp.sqrt(jnp.maximum(raw_p, 0.0)), 0.0)
        f_tgt = jnp.where(raw_t < thresh, jnp.sqrt(jnp.maximum(raw_t, 0.0)), 0.0)
        dist = jnp.power(f_pred, alpha) + jnp.power(f_tgt, alpha)

    err = (pT[:, 5:6] - pT[:, 6:7]) ** 2               # (t, 1): (pred - target)^2
    partial = jnp.sum(err * dist, keepdims=True)       # (1, 1)

    @pl.when(j == 0)
    def _init():
        out_ref[...] = jnp.zeros_like(out_ref)

    out_ref[...] += partial.reshape(1, 1, 1)


def _round_up(x, m):
    return ((x + m - 1) // m) * m


def _tile_sizes(n):
    """(N_pad, T, TQ): p-tile T and q-chunk TQ, multiples of 256 (full MXU output
    width on v6e/v7x); N is padded with neutral pixels, never falls back to T=N."""
    if n <= 512:
        t = _round_up(n, 256)
        return t, t, t
    tile = 512
    return _round_up(n, tile), tile, tile


def _vmem_limit_bytes(n_pad, t, tq):
    # Q (double-buffered, resident per batch) + P (double-buffered) + two (T,TQ)
    # dot chunks + small lane-padded per-p temporaries, with headroom; capped
    # generation-aware (v7x only has 64 MiB physical VMEM per core).
    est = 4 * (2 * 8 * n_pad + 2 * 8 * t + 2 * t * tq + 10 * 128 * t) + (1 << 20)
    try:
        cap = int(getattr(pltpu.get_tpu_info(), "vmem_capacity_bytes", 64 << 20))
    except Exception:
        cap = 64 << 20
    return int(min(max(2 * est, 32 << 20), max(cap // 2, 32 << 20)))


def hausdorff_dt_loss(pred, target, alpha=2.0):
    assert pred.ndim == target.ndim, "Prediction and target need to be of same dimension"
    assert pred.ndim == 3, "expected (B, H, W) masks"
    # TODO(synk): (B, C, H, W) channel handling (the reference module itself only
    # supports 2-D spatial masks per batch element).
    pred = pred.astype(jnp.float32)
    target = target.astype(jnp.float32)
    B, H, W = pred.shape
    N = H * W
    n_pad, T, TQ = _tile_sizes(N)
    n_tiles = n_pad // T
    n_chunks = n_pad // TQ

    max_d2 = float((H - 1) ** 2 + (W - 1) ** 2)
    big = 2.0 * max_d2 + 64.0      # same-class penalty (>> any real d2)
    thresh = max_d2 + 32.0         # separates "opposite pixel exists" from not

    idx = jnp.arange(n_pad, dtype=jnp.int32)
    valid = idx < N
    xi = (idx // W).astype(jnp.float32)
    yi = (idx % W).astype(jnp.float32)
    # Centered coordinates (halves magnitudes in the folded quadratic form);
    # padded pixels sit at the origin with zero class sign and zero values.
    xc = jnp.where(valid, xi - 0.5 * (H - 1), 0.0)
    yc = jnp.where(valid, yi - 0.5 * (W - 1), 0.0)
    qn = xc * xc + yc * yc

    pv = jnp.pad(pred.reshape(B, N), ((0, 0), (0, n_pad - N)))
    tv = jnp.pad(target.reshape(B, N), ((0, 0), (0, n_pad - N)))
    validb = jnp.broadcast_to(valid, (B, n_pad))
    g_pred = jnp.where(validb, 1.0 - 2.0 * (pv > 0.5).astype(jnp.float32), 0.0)
    g_tgt = jnp.where(validb, 1.0 - 2.0 * (tv > 0.5).astype(jnp.float32), 0.0)

    xb = jnp.broadcast_to(xc, (B, n_pad))
    yb = jnp.broadcast_to(yc, (B, n_pad))
    pnb = jnp.broadcast_to(qn, (B, n_pad))
    ones = jnp.ones((B, n_pad), jnp.float32)
    zeros = jnp.zeros((B, n_pad), jnp.float32)

    # Shared lane-dense P operand (LHS side, sliced per p-tile).
    P = jnp.stack([xb, yb, g_pred, g_tgt, ones, pv, tv, pnb], axis=1)        # (B,8,N_pad)

    # Shared lane-dense Q operand (RHS side, VMEM-resident per batch).
    # Padded q columns get dot = -BIG - |c_p|^2: never the max when a real
    # opposite-class pixel exists, and above `thresh` when it is the max.
    q4 = jnp.where(validb, -(pnb + 0.5 * big), -big)
    Q = jnp.stack([2.0 * xb, 2.0 * yb,
                   -0.5 * big * g_pred, -0.5 * big * g_tgt,
                   q4, zeros, zeros, -ones], axis=1)                          # (B,8,N_pad)

    kernel = functools.partial(_hausdorff_kernel, alpha=float(alpha),
                               thresh=thresh, tq=TQ, n_chunks=n_chunks)

    p_spec = pl.BlockSpec((1, 8, T), lambda b, j: (b, 0, j))
    q_spec = pl.BlockSpec((1, 8, n_pad), lambda b, j: (b, 0, 0))   # resident per batch
    out_spec = pl.BlockSpec((1, 1, 1), lambda b, j: (b, 0, 0))     # resident per batch

    out = pl.pallas_call(
        kernel,
        out_shape=jax.ShapeDtypeStruct((B, 1, 1), jnp.float32),
        grid_spec=pltpu.PrefetchScalarGridSpec(
            num_scalar_prefetch=0,
            grid=(B, n_tiles),
            in_specs=[p_spec, q_spec],
            out_specs=out_spec,
        ),
        compiler_params=pltpu.CompilerParams(
            # B is parallel (megacore on v7x when B > 1); the p-tile axis carries
            # the per-batch loss accumulator so it is "arbitrary".
            dimension_semantics=("parallel", "arbitrary"),
            vmem_limit_bytes=_vmem_limit_bytes(n_pad, T, TQ),
        ),
    )(P, Q)

    return jnp.sum(out) / float(B * H * W)


def _reference_loss(pred, target, alpha=2.0):
    """Pure-JAX reference of the intended forward pass (for self-check)."""
    B, H, W = pred.shape
    ii, jj = jnp.meshgrid(jnp.arange(H), jnp.arange(W), indexing="ij")
    x = ii.reshape(-1).astype(jnp.float32)
    y = jj.reshape(-1).astype(jnp.float32)
    d2 = (x[:, None] - x[None, :]) ** 2 + (y[:, None] - y[None, :]) ** 2

    def field(img):
        fg = img.reshape(-1) > 0.5
        opposite = fg[:, None] != fg[None, :]
        dmin = jnp.sqrt(jnp.min(jnp.where(opposite, d2, jnp.inf), axis=1))
        return jnp.where(jnp.isfinite(dmin), dmin, 0.0).reshape(H, W)

    pred_dt = jnp.stack([field(p) for p in pred])
    tgt_dt = jnp.stack([field(t) for t in target])
    err = (pred - target) ** 2
    dist = pred_dt ** alpha + tgt_dt ** alpha
    return jnp.mean(err * dist)


if __name__ == "__main__":
    key = jax.random.PRNGKey(0)
    k1, k2 = jax.random.split(key)
    B, H, W = 2, 16, 16
    pred = jax.random.uniform(k1, (B, H, W), dtype=jnp.float32)
    target = (jax.random.uniform(k2, (B, H, W)) > 0.5).astype(jnp.float32)

    loss = hausdorff_dt_loss(pred, target, alpha=2.0)
    loss = jax.block_until_ready(loss)

    ref = _reference_loss(pred, target, alpha=2.0)
    np.testing.assert_allclose(np.asarray(loss), np.asarray(ref),
                               rtol=1e-5, atol=1e-5)
    print("KERNEL_OK")
</pallas_src>

<mosaic_0001>
module attributes {stable_mosaic.version = 11 : i64} {
  func.func @_hausdorff_kernel(%arg0: i32, %arg1: i32, %arg2: memref<1x8x256xf32, #tpu.memory_space<vmem>>, %arg3: memref<1x8x256xf32, #tpu.memory_space<vmem>>, %arg4: memref<1x1x1xf32, #tpu.memory_space<vmem>>) attributes {dimension_semantics = [#tpu.dimension_semantics<parallel>, #tpu.dimension_semantics<arbitrary>], iteration_bounds = array<i64: 2, 1>, scalar_prefetch = 0 : i64, scratch_operands = 0 : i64, tpu.core_type = #tpu.core_type<tc>, window_params = [{transform_indices = @transform_0, window_bounds = array<i64: 1, 8, 256>}, {transform_indices = @transform_1, window_bounds = array<i64: 1, 8, 256>}, {transform_indices = @transform_2, window_bounds = array<i64: 1, 1, 1>}]} {
    %c0 = arith.constant 0 : index
    %c0_0 = arith.constant 0 : index
    %c0_1 = arith.constant 0 : index
    %0 = vector.load %arg2[%c0, %c0_0, %c0_1] : memref<1x8x256xf32, #tpu.memory_space<vmem>>, vector<1x8x256xf32>
    %1 = vector.shape_cast %0 : vector<1x8x256xf32> to vector<8x256xf32>
    %2 = tpu.transpose %1, [1, 0] : vector<8x256xf32> -> vector<256x8xf32>
    %3 = tpu.iota {dimensions = array<i32: 1>} : vector<256x8xi32>
    %c3_i32 = arith.constant 3 : i32
    %4 = vector.broadcast %c3_i32 : i32 to vector<256x8xi32>
    %5 = arith.cmpi eq, %3, %4 : vector<256x8xi32>
    %cst = arith.constant 0.000000e+00 : f32
    %6 = vector.broadcast %cst : f32 to vector<256x8xf32>
    %7 = arith.select %5, %6, %2 : vector<256x8xi1>, vector<256x8xf32>
    %c2_i32 = arith.constant 2 : i32
    %8 = vector.broadcast %c2_i32 : i32 to vector<256x8xi32>
    %9 = arith.cmpi eq, %3, %8 : vector<256x8xi32>
    %cst_2 = arith.constant 0.000000e+00 : f32
    %10 = vector.broadcast %cst_2 : f32 to vector<256x8xf32>
    %11 = arith.select %9, %10, %2 : vector<256x8xi1>, vector<256x8xf32>
    %cst_3 = arith.constant -3.40282347E+38 : f32
    %12 = vector.broadcast %cst_3 : f32 to vector<256x1xf32>
    %c0_4 = arith.constant 0 : index
    %c0_5 = arith.constant 0 : index
    %c0_6 = arith.constant 0 : index
    %13 = vector.load %arg3[%c0_4, %c0_5, %c0_6] : memref<1x8x256xf32, #tpu.memory_space<vmem>>, vector<1x8x256xf32>
    %14 = vector.shape_cast %13 : vector<1x8x256xf32> to vector<8x256xf32>
    %cst_7 = arith.constant dense<0.000000e+00> : vector<256x256xf32>
    %15 = tpu.matmul %7, %14, %cst_7 {dimension_numbers = #tpu.dot_dimension_numbers<[1], [0], [0], [1], [0, 0, 1, 1], [], []>} : vector<256x8xf32>, vector<8x256xf32>, vector<256x256xf32> -> vector<256x256xf32>
    %cst_8 = arith.constant dense<0.000000e+00> : vector<256x256xf32>
    %16 = tpu.matmul %11, %14, %cst_8 {dimension_numbers = #tpu.dot_dimension_numbers<[1], [0], [0], [1], [0, 0, 1, 1], [], []>} : vector<256x8xf32>, vector<8x256xf32>, vector<256x256xf32> -> vector<256x256xf32>
    %cst_9 = arith.constant dense<0xFF800000> : vector<256xf32>
    %17 = vector.multi_reduction <maximumf>, %15, %cst_9 [1] : vector<256x256xf32> to vector<256xf32>
    %18 = vector.shape_cast %17 : vector<256xf32> to vector<256x1xf32>
    %19 = arith.maximumf %12, %18 : vector<256x1xf32>
    %cst_10 = arith.constant dense<0xFF800000> : vector<256xf32>
    %20 = vector.multi_reduction <maximumf>, %16, %cst_10 [1] : vector<256x256xf32> to vector<256xf32>
    %21 = vector.shape_cast %20 : vector<256xf32> to vector<256x1xf32>
    %22 = arith.maximumf %12, %21 : vector<256x1xf32>
    %cst_11 = arith.constant 0.000000e+00 : f32
    %23 = vector.broadcast %cst_11 : f32 to vector<256x1xf32>
    %24 = arith.subf %23, %19 : vector<256x1xf32>
    %cst_12 = arith.constant 0.000000e+00 : f32
    %25 = vector.broadcast %cst_12 : f32 to vector<256x1xf32>
    %26 = arith.subf %25, %22 : vector<256x1xf32>
    %cst_13 = arith.constant 4.820000e+02 : f32
    %27 = vector.broadcast %cst_13 : f32 to vector<256x1xf32>
    %28 = arith.cmpf olt, %24, %27 : vector<256x1xf32>
    %cst_14 = arith.constant 0.000000e+00 : f32
    %29 = vector.broadcast %cst_14 : f32 to vector<256x1xf32>
    %30 = arith.maximumf %24, %29 : vector<256x1xf32>
    %cst_15 = arith.constant 0.000000e+00 : f32
    %31 = vector.broadcast %cst_15 : f32 to vector<256x1xf32>
    %32 = arith.select %28, %30, %31 : vector<256x1xi1>, vector<256x1xf32>
    %cst_16 = arith.constant 4.820000e+02 : f32
    %33 = vector.broadcast %cst_16 : f32 to vector<256x1xf32>
    %34 = arith.cmpf olt, %26, %33 : vector<256x1xf32>
    %cst_17 = arith.constant 0.000000e+00 : f32
    %35 = vector.broadcast %cst_17 : f32 to vector<256x1xf32>
    %36 = arith.maximumf %26, %35 : vector<256x1xf32>
    %cst_18 = arith.constant 0.000000e+00 : f32
    %37 = vector.broadcast %cst_18 : f32 to vector<256x1xf32>
    %38 = arith.select %34, %36, %37 : vector<256x1xi1>, vector<256x1xf32>
    %39 = arith.addf %32, %38 : vector<256x1xf32>
    %40 = vector.extract_strided_slice %2 {offsets = [0, 5], sizes = [256, 1], strides = [1, 1]} : vector<256x8xf32> to vector<256x1xf32>
    %41 = vector.extract_strided_slice %2 {offsets = [0, 6], sizes = [256, 1], strides = [1, 1]} : vector<256x8xf32> to vector<256x1xf32>
    %42 = arith.subf %40, %41 : vector<256x1xf32>
    %43 = arith.mulf %42, %42 : vector<256x1xf32>
    %44 = arith.mulf %43, %39 : vector<256x1xf32>
    %45 = vector.shape_cast %44 : vector<256x1xf32> to vector<1x256x1xf32>
    %cst_19 = arith.constant dense<0.000000e+00> : vector<1xf32>
    %46 = vector.multi_reduction <add>, %45, %cst_19 [1, 2] : vector<1x256x1xf32> to vector<1xf32>
    %47 = vector.shape_cast %46 : vector<1xf32> to vector<1x1x1xf32>
    %48 = vector.extract %47[0, 0, 0] : f32 from vector<1x1x1xf32>
    %49 = vector.broadcast %48 : f32 to vector<1x1xf32>
    %c0_i32 = arith.constant 0 : i32
    %50 = arith.cmpi eq, %arg1, %c0_i32 : i32
    %51 = arith.extui %50 : i1 to i32
    %c0_i32_20 = arith.constant 0 : i32
    %52 = arith.cmpi ne, %51, %c0_i32_20 : i32
    scf.if %52 {
      %cst_27 = arith.constant 0.000000e+00 : f32
      %57 = vector.broadcast %cst_27 : f32 to vector<1x1x1xf32>
      %c0_28 = arith.constant 0 : index
      %c0_29 = arith.constant 0 : index
      %c0_30 = arith.constant 0 : index
      %58 = vector.load %arg4[%c0_28, %c0_29, %c0_30] : memref<1x1x1xf32, #tpu.memory_space<vmem>>, vector<1x1x1xf32>
      tpu.vector_store %arg4[%c0_28, %c0_29, %c0_30], %57 {strides = array<i32>} : memref<1x1x1xf32, #tpu.memory_space<vmem>>, vector<1x1x1xf32>,
    } else {
    }
    %c0_21 = arith.constant 0 : index
    %c0_22 = arith.constant 0 : index
    %c0_23 = arith.constant 0 : index
    %53 = vector.load %arg4[%c0_21, %c0_22, %c0_23] : memref<1x1x1xf32, #tpu.memory_space<vmem>>, vector<1x1x1xf32>
    %54 = vector.shape_cast %49 : vector<1x1xf32> to vector<1x1x1xf32>
    %55 = arith.addf %53, %54 : vector<1x1x1xf32>
    %c0_24 = arith.constant 0 : index
    %c0_25 = arith.constant 0 : index
    %c0_26 = arith.constant 0 : index
    %56 = vector.load %arg4[%c0_24, %c0_25, %c0_26] : memref<1x1x1xf32, #tpu.memory_space<vmem>>, vector<1x1x1xf32>
    tpu.vector_store %arg4[%c0_24, %c0_25, %c0_26], %55 {strides = array<i32>} : memref<1x1x1xf32, #tpu.memory_space<vmem>>, vector<1x1x1xf32>,
    return
  }
  func.func @transform_0(%arg0: i32, %arg1: i32) -> (i32, i32, i32) {
    %c0_i32 = arith.constant 0 : i32
    %c0_i32_0 = arith.constant 0 : i32
    return %arg0, %c0_i32, %arg1 : i32, i32, i32
  }
  func.func @transform_1(%arg0: i32, %arg1: i32) -> (i32, i32, i32) {
    %c0_i32 = arith.constant 0 : i32
    %c0_i32_0 = arith.constant 0 : i32
    %c0_i32_1 = arith.constant 0 : i32
    return %arg0, %c0_i32, %c0_i32_0 : i32, i32, i32
  }
  func.func @transform_2(%arg0: i32, %arg1: i32) -> (i32, i32, i32) {
    %c0_i32 = arith.constant 0 : i32
    %c0_i32_0 = arith.constant 0 : i32
    %c0_i32_1 = arith.constant 0 : i32
    return %arg0, %c0_i32, %c0_i32_0 : i32, i32, i32
  }
}

</mosaic_0001>

<llo_original>
// kernel: tpu_custom_call.1
$region0: #{tpu_custom_call.1}
  #allocation0 [shape = 'u32[]', space=smem, size = 0x4, offset = 0x4, fixed_abs, tag = 'smem constant byte address 0x4 - core index']
  #allocation1 [shape = 'u32[72,128]{1,0:T(1,128)}', space=vmem, size = 0x9000, scoped, tag = 'internal scratch']
  %s0 = inlined_call_operand.hbm [shape: f32[2,8,256], index: 0, kind: input, shape index: {}]
  %s1 = inlined_call_operand.hbm [shape: f32[2,8,256], index: 1, kind: input, shape index: {}]
  %s2 = inlined_call_operand.vmem [shape: f32[2,1,1], index: 2, kind: output, shape index: {}]
  %s3 = sld [smem:[#allocation0]]
  $region53: #{tpu_custom_call.1} parent=0
    _
  %s5 = ssub.s32 1, %s3
  %s6 = scalar_select 0, %s5, %s3
  $region1: #{tpu_custom_call.1} parent=0
    #allocation2 [shape = 'u8[16384]{0}', space=vmem, size = 0x4000, scoped, tag = 'input window, operand 0']
    #allocation3 [shape = 's32[2]{0}', space=sflag, size = 0x8, scoped, tag = 'scoped memory for tpu_custom_call.1']
    #allocation4 [shape = 'u8[16384]{0}', space=vmem, size = 0x4000, scoped, tag = 'input window, operand 1']
    #allocation5 [shape = 's32[2]{0}', space=sflag, size = 0x8, scoped, tag = 'scoped memory for tpu_custom_call.1']
    %7 = vsyncpa [#allocation3], 0
    %s8 = scalar_lea.sflag [#allocation3], 1
    %9 = vsyncpa %s8, 0
    %10 = vsyncpa [#allocation5], 0
    %s11 = scalar_lea.sflag [#allocation5], 1
    %12 = vsyncpa %s11, 0
    loop: start=0, step=1, limit=4
    $region2: #{tpu_custom_call.1} parent=1 // loop_pre_header
      _
    $region3: #{tpu_custom_call.1} parent=1 // loop_header
      %s14 = sphi 0, %s18
      %p15 = scmp.ge.s32.totalorder %s14, 4
      %s21 = sphi 0, %s33
      %s22 = sphi 0, %s29
      %s23 = sphi 0, %s21
      %s24 = sphi 0, %s22
      %s25 = sphi 0, %s23
      %s26 = sphi 0, %s24
      %s38 = sphi 0, %s40
      %s41 = sphi 0, %s38
      %s42 = sphi 0, %s41
      %s58 = sphi 0, %s42
      %s64 = sphi 0, %s66
      %s67 = sphi 0, %s64
      %s68 = sphi 0, %s67
      %s84 = sphi 0, %s68
      %s90 = sphi 0, %s92
      %s93 = sphi 0, %s90
      %s94 = sphi 0, %s93
      %s110 = sphi 0, %s94
    $region4: #{tpu_custom_call.1} parent=1 // loop_header_branch
      %17 = sbr.rel (%p15) target = $region8
    $region5: #{tpu_custom_call.1} parent=1 // loop_body
      %s19 = ssub.s32 %s14, 1
      %s20 = ssub.s32 %s14, 2
      %s27 = sadd.s32 1, %s22
      %p28 = scmp.ge.s32.totalorder %s27, 1
      %s29 = scalar_select %p28, 0, %s27
      %s30 = sadd.s32 1, %s21
      %s31 = scalar_select %p28, %s30, %s21
      %p32 = scmp.ge.s32.totalorder %s31, 2
      %s33 = scalar_select %p32, 0, %s31
      %s34 = ssub.s32 %s21, %s33
      %s35 = ssub.s32 %s22, %s29
      %s36 = sor.u32 %s34, %s35
      %p37 = scmp.eq.s32.totalorder %s36, 0
      %s39 = sadd.s32 %s38, 1
      %s40 = scalar_select %p37, %s38, %s39
      %p43 = pneg %p37
      %p44 = scmp.eq.s32.totalorder %s14, 1
      %p45 = por %p43, %p44
      %p46 = scmp.ne.s32.totalorder %s38, %s41
      %p47 = scmp.eq.s32.totalorder %s14, 0
      %p48 = por %p46, %p47
      %p49 = scmp.ne.s32.totalorder %s38, %s41
      %p50 = scmp.eq.s32.totalorder %s19, 1
      %p51 = por %p49, %p50
      %p52 = scmp.ne.s32.totalorder %s41, %s42
      %p53 = scmp.eq.s32.totalorder %s19, 0
      %p54 = por %p52, %p53
      %p55 = scmp.ne.s32.totalorder %s41, %s42
      %p56 = scmp.eq.s32.totalorder %s20, 1
      %p57 = por %p55, %p56
      %p59 = scmp.ne.s32.totalorder %s42, %s58
      %p60 = scmp.eq.s32.totalorder %s20, 0
      %p61 = por %p59, %p60
      %s62 = ssub.s32 %s21, %s33
      %p63 = scmp.eq.s32.totalorder %s62, 0
      %s65 = sadd.s32 %s64, 1
      %s66 = scalar_select %p63, %s64, %s65
      %p69 = pneg %p63
      %p70 = scmp.eq.s32.totalorder %s14, 1
      %p71 = por %p69, %p70
      %p72 = scmp.ne.s32.totalorder %s64, %s67
      %p73 = scmp.eq.s32.totalorder %s14, 0
      %p74 = por %p72, %p73
      %p75 = scmp.ne.s32.totalorder %s64, %s67
      %p76 = scmp.eq.s32.totalorder %s19, 1
      %p77 = por %p75, %p76
      %p78 = scmp.ne.s32.totalorder %s67, %s68
      %p79 = scmp.eq.s32.totalorder %s19, 0
      %p80 = por %p78, %p79
      %p81 = scmp.ne.s32.totalorder %s67, %s68
      %p82 = scmp.eq.s32.totalorder %s20, 1
      %p83 = por %p81, %p82
      %p85 = scmp.ne.s32.totalorder %s68, %s84
      %p86 = scmp.eq.s32.totalorder %s20, 0
      %p87 = por %p85, %p86
      %s88 = ssub.s32 %s21, %s33
      %p89 = scmp.eq.s32.totalorder %s88, 0
      %s91 = sadd.s32 %s90, 1
      %s92 = scalar_select %p89, %s90, %s91
      %p95 = pneg %p89
      %p96 = scmp.eq.s32.totalorder %s14, 1
      %p97 = por %p95, %p96
      %p98 = scmp.ne.s32.totalorder %s90, %s93
      %p99 = scmp.eq.s32.totalorder %s14, 0
      %p100 = por %p98, %p99
      %p101 = scmp.ne.s32.totalorder %s90, %s93
      %p102 = scmp.eq.s32.totalorder %s19, 1
      %p103 = por %p101, %p102
      %p104 = scmp.ne.s32.totalorder %s93, %s94
      %p105 = scmp.eq.s32.totalorder %s19, 0
      %p106 = por %p104, %p105
      %p107 = scmp.ne.s32.totalorder %s93, %s94
      %p108 = scmp.eq.s32.totalorder %s20, 1
      %p109 = por %p107, %p108
      %p111 = scmp.ne.s32.totalorder %s94, %s110
      %p112 = scmp.eq.s32.totalorder %s20, 0
      %p113 = por %p111, %p112
      %p114 = scmp.le.s32.totalorder 1, %s14
      %p115 = scmp.lt.s32.totalorder %s14, 3
      %p116 = pnand %p114, %p115
      %p117 = pneg %p116
      // Predicated region
      $region9: #{tpu_custom_call.1} parent=5 // pred_check
        _
      $region10: #{tpu_custom_call.1} parent=5 // pred_check_branch
        %119 = sbr.rel (%p116) target = $region12
      $region11: #{tpu_custom_call.1} parent=5 // pred_region
        %s120 = ssub.s32 %s14, 1
      $region12: #{tpu_custom_call.1} parent=5 // pred_fallthru
        _
      %p121 = scmp.lt.s32.totalorder %s14, 2
      // Predicated region
      $region13: #{tpu_custom_call.1} parent=5 // pred_check
        %p122 = pneg %p121
      $region14: #{tpu_custom_call.1} parent=5 // pred_check_branch
        %124 = sbr.rel (%p122) target = $region16
      $region15: #{tpu_custom_call.1} parent=5 // pred_region
        // Predicated region
        $region17: #{tpu_custom_call.1} parent=15 // pred_check
          %p125 = pneg %p48
        $region18: #{tpu_custom_call.1} parent=15 // pred_check_branch
          %127 = sbr.rel (%p125) target = $region20
        $region19: #{tpu_custom_call.1} parent=15 // pred_region
          %s128 = sand.u32 %s38, 1
          %s129 = scalar_lea.sflag [#allocation3], %s128
          %s130 = sand.u32 %s38, 1
          %s131 = smul.addr %s130, 16
          %s132 = scalar_lea.vmem [#allocation2], %s131
          %s133 = smul.u32 2, %s22
          %135 = vsyncadd %s129, 0
          %s136 = smul.addr %s21, 2
          %s137 = sadd.s32 %s133, %s136
          %s138 = smul.addr %s137, 8
          %s139 = scalar_lea.hbm %s0, %s138
          %s141 = sshll.u32 %s139, 4
          %s142 = int_to_ptr.hbm [resolvable:$true] %s141
          %s143 = sshll.u32 %s132, 4
          %s144 = int_to_ptr.vmem [resolvable:$true] %s143
          %146 = dma.hbm_to_vmem [thread:$0]  %s142, 256, %s144, %s129
        $region20: #{tpu_custom_call.1} parent=15 // pred_fallthru
          _
        // Predicated region
        $region21: #{tpu_custom_call.1} parent=15 // pred_check
          %p147 = pneg %p74
        $region22: #{tpu_custom_call.1} parent=15 // pred_check_branch
          %149 = sbr.rel (%p147) target = $region24
        $region23: #{tpu_custom_call.1} parent=15 // pred_region
          %s150 = sand.u32 %s64, 1
          %s151 = scalar_lea.sflag [#allocation5], %s150
          %s152 = sand.u32 %s64, 1
          %s153 = smul.addr %s152, 16
          %s154 = scalar_lea.vmem [#allocation4], %s153
          %156 = vsyncadd %s151, 0
          %s157 = smul.addr %s21, 2
          %s158 = smul.addr %s157, 8
          %s159 = scalar_lea.hbm %s1, %s158
          %s161 = sshll.u32 %s159, 4
          %s162 = int_to_ptr.hbm [resolvable:$true] %s161
          %s163 = sshll.u32 %s154, 4
          %s164 = int_to_ptr.vmem [resolvable:$true] %s163
          %166 = dma.hbm_to_vmem [thread:$0]  %s162, 256, %s164, %s151
        $region24: #{tpu_custom_call.1} parent=15 // pred_fallthru
          _
      $region16: #{tpu_custom_call.1} parent=5 // pred_fallthru
        _
      %p167 = scmp.le.s32.totalorder 1, %s14
      %p168 = scmp.lt.s32.totalorder %s14, 3
      %p169 = pnand %p167, %p168
      %p170 = pneg %p169
      // Predicated region
      $region25: #{tpu_custom_call.1} parent=5 // pred_check
        _
      $region26: #{tpu_custom_call.1} parent=5 // pred_check_branch
        %172 = sbr.rel (%p169) target = $region28
      $region27: #{tpu_custom_call.1} parent=5 // pred_region
        %s173 = ssub.s32 %s14, 1
        %s174 = sand.u32 %s41, 1
        %s175 = scalar_lea.sflag [#allocation3], %s174
        %s176 = sand.u32 %s41, 1
        %s177 = smul.addr %s176, 16
        %s178 = scalar_lea.vmem [#allocation2], %s177
        // Predicated region
        $region29: #{tpu_custom_call.1} parent=27 // pred_check
          %p179 = pneg %p54
        $region30: #{tpu_custom_call.1} parent=27 // pred_check_branch
          %181 = sbr.rel (%p179) target = $region32
        $region31: #{tpu_custom_call.1} parent=27 // pred_region
          %183 = dma.done %s175, 256
        $region32: #{tpu_custom_call.1} parent=27 // pred_fallthru
          _
        %s184 = sand.u32 %s67, 1
        %s185 = scalar_lea.sflag [#allocation5], %s184
        %s186 = sand.u32 %s67, 1
        %s187 = smul.addr %s186, 16
        %s188 = scalar_lea.vmem [#allocation4], %s187
        // Predicated region
        $region33: #{tpu_custom_call.1} parent=27 // pred_check
          %p189 = pneg %p80
        $region34: #{tpu_custom_call.1} parent=27 // pred_check_branch
          %191 = sbr.rel (%p189) target = $region36
        $region35: #{tpu_custom_call.1} parent=27 // pred_region
          %193 = dma.done %s185, 256
        $region36: #{tpu_custom_call.1} parent=27 // pred_fallthru
          _
        %s194 = sand.u32 %s41, 1
        %s195 = scalar_lea.sflag [#allocation3], %s194
        %s196 = sand.u32 %s41, 1
        %s197 = smul.addr %s196, 16
        %s198 = scalar_lea.vmem [#allocation2], %s197
        %p199 = pneg %p54
        %p200 = pneg %p51
        %s201 = sand.u32 %s67, 1
        %s202 = scalar_lea.sflag [#allocation5], %s201
        %s203 = sand.u32 %s67, 1
        %s204 = smul.addr %s203, 16
        %s205 = scalar_lea.vmem [#allocation4], %s204
        %p206 = pneg %p80
        %p207 = pneg %p77
        %p208 = pneg %p106
        %p209 = pneg %p103
        %p210 = scmp.lt.s32.totalorder %s23, 1
        %s211 = scalar_select %p210, %s23, 1
        %s212 = scalar_lea.vmem %s2, %s211
        %s213 = smul.u32 2, %s24
        %p214 = scmp.lt.s32.totalorder %s23, 1
        %s215 = scalar_select %p214, %s23, 1
        %s216 = scalar_lea.vmem %s2, %s215
        %v217 = vld [vmem:[%s178] sm:$0xff]
        %v218 = vld [vmem:[%s178 + $0x8] sm:$0xff]
        %219 = vxpose.xlu0.b32.start [1/16] %v217, 128
        %220 = vxpose.xlu0.b32.cont [2/16] 0.0, 128
        %221 = vxpose.xlu0.b32.cont [3/16] 0.0, 128
        %222 = vxpose.xlu0.b32.cont [4/16] 0.0, 128
        %223 = vxpose.xlu0.b32.cont [5/16] 0.0, 128
        %224 = vxpose.xlu0.b32.cont [6/16] 0.0, 128
        %225 = vxpose.xlu0.b32.cont [7/16] 0.0, 128
        %226 = vxpose.xlu0.b32.cont [8/16] 0.0, 128
        %227 = vxpose.xlu0.b32.cont [9/16] 0.0, 128
        %228 = vxpose.xlu0.b32.cont [10/16] 0.0, 128
        %229 = vxpose.xlu0.b32.cont [11/16] 0.0, 128
        %230 = vxpose.xlu0.b32.cont [12/16] 0.0, 128
        %231 = vxpose.xlu0.b32.cont [13/16] 0.0, 128
        %232 = vxpose.xlu0.b32.cont [14/16] 0.0, 128
        %233 = vxpose.xlu0.b32.cont [15/16] 0.0, 128
        %234 = vxpose.xlu0.b32.end [16/16] 0.0, 128
        %v235 = vpop.trf.xlu0
        %v236 = vpop.trf.xlu0
        %v237 = vpop.trf.xlu0
        %v238 = vpop.trf.xlu0
        %v239 = vpop.trf.xlu0
        %v240 = vpop.trf.xlu0
        %v241 = vpop.trf.xlu0
        %v242 = vpop.trf.xlu0
        %v243 = vpop.trf.xlu0
        %v244 = vpop.trf.xlu0
        %v245 = vpop.trf.xlu0
        %v246 = vpop.trf.xlu0
        %v247 = vpop.trf.xlu0
        %v248 = vpop.trf.xlu0
        %v249 = vpop.trf.xlu0
        %v250 = vpop.trf.xlu0
        %251 = vxpose.xlu0.b32.start [1/16] %v218, 128
        %252 = vxpose.xlu0.b32.cont [2/16] 0.0, 128
        %253 = vxpose.xlu0.b32.cont [3/16] 0.0, 128
        %254 = vxpose.xlu0.b32.cont [4/16] 0.0, 128
        %255 = vxpose.xlu0.b32.cont [5/16] 0.0, 128
        %256 = vxpose.xlu0.b32.cont [6/16] 0.0, 128
        %257 = vxpose.xlu0.b32.cont [7/16] 0.0, 128
        %258 = vxpose.xlu0.b32.cont [8/16] 0.0, 128
        %259 = vxpose.xlu0.b32.cont [9/16] 0.0, 128
        %260 = vxpose.xlu0.b32.cont [10/16] 0.0, 128
        %261 = vxpose.xlu0.b32.cont [11/16] 0.0, 128
        %262 = vxpose.xlu0.b32.cont [12/16] 0.0, 128
        %263 = vxpose.xlu0.b32.cont [13/16] 0.0, 128
        %264 = vxpose.xlu0.b32.cont [14/16] 0.0, 128
        %265 = vxpose.xlu0.b32.cont [15/16] 0.0, 128
        %266 = vxpose.xlu0.b32.end [16/16] 0.0, 128
        %v267 = vpop.trf.xlu0
        %v268 = vpop.trf.xlu0
        %v269 = vpop.trf.xlu0
        %v270 = vpop.trf.xlu0
        %v271 = vpop.trf.xlu0
        %v272 = vpop.trf.xlu0
        %v273 = vpop.trf.xlu0
        %v274 = vpop.trf.xlu0
        %v275 = vpop.trf.xlu0
        %v276 = vpop.trf.xlu0
        %v277 = vpop.trf.xlu0
        %v278 = vpop.trf.xlu0
        %v279 = vpop.trf.xlu0
        %v280 = vpop.trf.xlu0
        %v281 = vpop.trf.xlu0
        %v282 = vpop.trf.xlu0
        %v283 = vlaneseq
        %v284 = vand.u32 %v283, 127
        %vm285 = vcmp.eq.s32.totalorder %v284, 3
        %v286 = vsel %vm285, 0.0, %v235
        %v287 = vsel %vm285, 0.0, %v236
        %v288 = vsel %vm285, 0.0, %v237
        %v289 = vsel %vm285, 0.0, %v238
        %v290 = vsel %vm285, 0.0, %v239
        %v291 = vsel %vm285, 0.0, %v240
        %v292 = vsel %vm285, 0.0, %v241
        %v293 = vsel %vm285, 0.0, %v242
        %v294 = vsel %vm285, 0.0, %v243
        %v295 = vsel %vm285, 0.0, %v244
        %v296 = vsel %vm285, 0.0, %v245
        %v297 = vsel %vm285, 0.0, %v246
        %v298 = vsel %vm285, 0.0, %v247
        %v299 = vsel %vm285, 0.0, %v248
        %v300 = vsel %vm285, 0.0, %v249
        %v301 = vsel %vm285, 0.0, %v250
        %v302 = vsel %vm285, 0.0, %v267
        %v303 = vsel %vm285, 0.0, %v268
        %v304 = vsel %vm285, 0.0, %v269
        %v305 = vsel %vm285, 0.0, %v270
        %v306 = vsel %vm285, 0.0, %v271
        %v307 = vsel %vm285, 0.0, %v272
        %v308 = vsel %vm285, 0.0, %v273
        %v309 = vsel %vm285, 0.0, %v274
        %v310 = vsel %vm285, 0.0, %v275
        %v311 = vsel %vm285, 0.0, %v276
        %v312 = vsel %vm285, 0.0, %v277
        %v313 = vsel %vm285, 0.0, %v278
        %v314 = vsel %vm285, 0.0, %v279
        %v315 = vsel %vm285, 0.0, %v280
        %v316 = vsel %vm285, 0.0, %v281
        %v317 = vsel %vm285, 0.0, %v282
        %vm318 = vcmp.eq.s32.totalorder %v284, 2
        %v319 = vsel %vm318, 0.0, %v235
        %v320 = vsel %vm318, 0.0, %v236
        %v321 = vsel %vm318, 0.0, %v237
        %v322 = vsel %vm318, 0.0, %v238
        %v323 = vsel %vm318, 0.0, %v239
        %v324 = vsel %vm318, 0.0, %v240
        %v325 = vsel %vm318, 0.0, %v241
        %v326 = vsel %vm318, 0.0, %v242
        %v327 = vsel %vm318, 0.0, %v243
        %v328 = vsel %vm318, 0.0, %v244
        %v329 = vsel %vm318, 0.0, %v245
        %v330 = vsel %vm318, 0.0, %v246
        %v331 = vsel %vm318, 0.0, %v247
        %v332 = vsel %vm318, 0.0, %v248
        %v333 = vsel %vm318, 0.0, %v249
        %v334 = vsel %vm318, 0.0, %v250
        %v335 = vsel %vm318, 0.0, %v267
        %v336 = vsel %vm318, 0.0, %v268
        %v337 = vsel %vm318, 0.0, %v269
        %v338 = vsel %vm318, 0.0, %v270
        %v339 = vsel %vm318, 0.0, %v271
        %v340 = vsel %vm318, 0.0, %v272
        %v341 = vsel %vm318, 0.0, %v273
        %v342 = vsel %vm318, 0.0, %v274
        %v343 = vsel %vm318, 0.0, %v275
        %v344 = vsel %vm318, 0.0, %v276
        %v345 = vsel %vm318, 0.0, %v277
        %v346 = vsel %vm318, 0.0, %v278
        %v347 = vsel %vm318, 0.0, %v279
        %v348 = vsel %vm318, 0.0, %v280
        %v349 = vsel %vm318, 0.0, %v281
        %v350 = vsel %vm318, 0.0, %v282
        %v351 = vld [vmem:[%s188] sm:$0xff]
        %v352 = vld [vmem:[%s188 + $0x8] sm:$0xff]
        %vm353 = vcmask 64512
        %v355 = vsel %vm353, %v286, 0
        %v358 = vsel %vm353, %v287, 0
        %v361 = vsel %vm353, %v288, 0
        %v364 = vsel %vm353, %v289, 0
        %v367 = vsel %vm353, %v290, 0
        %v370 = vsel %vm353, %v291, 0
        %v373 = vsel %vm353, %v292, 0
        %v376 = vsel %vm353, %v293, 0
        %v379 = vsel %vm353, %v294, 0
        %v382 = vsel %vm353, %v295, 0
        %v385 = vsel %vm353, %v296, 0
        %v388 = vsel %vm353, %v297, 0
        %v391 = vsel %vm353, %v298, 0
        %v394 = vsel %vm353, %v299, 0
        %v397 = vsel %vm353, %v300, 0
        %v400 = vsel %vm353, %v301, 0
        %v403 = vsel %vm353, %v302, 0
        %v406 = vsel %vm353, %v303, 0
        %v409 = vsel %vm353, %v304, 0
        %v412 = vsel %vm353, %v305, 0
        %v415 = vsel %vm353, %v306, 0
        %v418 = vsel %vm353, %v307, 0
        %v421 = vsel %vm353, %v308, 0
        %v424 = vsel %vm353, %v309, 0
        %v427 = vsel %vm353, %v310, 0
        %v430 = vsel %vm353, %v311, 0
        %v433 = vsel %vm353, %v312, 0
        %v436 = vsel %vm353, %v313, 0
        %v439 = vsel %vm353, %v314, 0
        %v442 = vsel %vm353, %v315, 0
        %v445 = vsel %vm353, %v316, 0
        %v448 = vsel %vm353, %v317, 0
        %450 = vmatpush.msra.mxu0 0.0
        %451 = vmatpush.msra.mxu0 0.0
        %452 = vmatpush.msra.mxu0 0.0
        %453 = vmatpush.msra.mxu0 0.0
        %454 = vmatpush.msra.mxu0 0.0
        %455 = vmatpush.msra.mxu0 0.0
        %456 = vmatpush.msra.mxu0 0.0
        %457 = vmatpush.msra.mxu0 0.0
        %458 = vmatpush.msra.mxu0 0.0
        %459 = vmatpush.msra.mxu0 0.0
        %460 = vmatpush.msra.mxu0 0.0
        %461 = vmatpush.msra.mxu0 0.0
        %462 = vmatpush.msra.mxu0 0.0
        %463 = vmatpush.msra.mxu0 0.0
        %464 = vmatpush.msra.mxu0 0.0
        %465 = vmatpush.msra.mxu0 %v351
        %466 = vmatmul.f32.gmra.mxu0 %v355
        %v467 = vpop.f32.mrf.mxu0
        %v468 = vadd.f32 0.0, %v467
        %469 = vmatmul.f32.gmra.mxu0 %v358
        %v470 = vpop.f32.mrf.mxu0
        %v471 = vadd.f32 0.0, %v470
        %472 = vmatmul.f32.gmra.mxu0 %v361
        %v473 = vpop.f32.mrf.mxu0
        %v474 = vadd.f32 0.0, %v473
        %475 = vmatmul.f32.gmra.mxu0 %v364
        %v476 = vpop.f32.mrf.mxu0
        %v477 = vadd.f32 0.0, %v476
        %478 = vmatmul.f32.gmra.mxu0 %v367
        %v479 = vpop.f32.mrf.mxu0
        %v480 = vadd.f32 0.0, %v479
        %481 = vmatmul.f32.gmra.mxu0 %v370
        %v482 = vpop.f32.mrf.mxu0
        %v483 = vadd.f32 0.0, %v482
        %484 = vmatmul.f32.gmra.mxu0 %v373
        %v485 = vpop.f32.mrf.mxu0
        %v486 = vadd.f32 0.0, %v485
        %487 = vmatmul.f32.gmra.mxu0 %v376
        %v488 = vpop.f32.mrf.mxu0
        %v489 = vadd.f32 0.0, %v488
        %490 = vmatmul.f32.gmra.mxu0 %v379
        %v491 = vpop.f32.mrf.mxu0
        %v492 = vadd.f32 0.0, %v491
        %493 = vmatmul.f32.gmra.mxu0 %v382
        %v494 = vpop.f32.mrf.mxu0
        %v495 = vadd.f32 0.0, %v494
        %496 = vmatmul.f32.gmra.mxu0 %v385
        %v497 = vpop.f32.mrf.mxu0
        %v498 = vadd.f32 0.0, %v497
        %499 = vmatmul.f32.gmra.mxu0 %v388
        %v500 = vpop.f32.mrf.mxu0
        %v501 = vadd.f32 0.0, %v500
        %502 = vmatmul.f32.gmra.mxu0 %v391
        %v503 = vpop.f32.mrf.mxu0
        %v504 = vadd.f32 0.0, %v503
        %505 = vmatmul.f32.gmra.mxu0 %v394
        %v506 = vpop.f32.mrf.mxu0
        %v507 = vadd.f32 0.0, %v506
        %508 = vmatmul.f32.gmra.mxu0 %v397
        %v509 = vpop.f32.mrf.mxu0
        %v510 = vadd.f32 0.0, %v509
        %511 = vmatmul.f32.gmra.mxu0 %v400
        %v512 = vpop.f32.mrf.mxu0
        %v513 = vadd.f32 0.0, %v512
        %514 = vmatmul.f32.gmra.mxu0 %v403
        %v515 = vpop.f32.mrf.mxu0
        %v516 = vadd.f32 0.0, %v515
        %517 = vmatmul.f32.gmra.mxu0 %v406
        %v518 = vpop.f32.mrf.mxu0
        %v519 = vadd.f32 0.0, %v518
        %520 = vmatmul.f32.gmra.mxu0 %v409
        %v521 = vpop.f32.mrf.mxu0
        %v522 = vadd.f32 0.0, %v521
        %523 = vmatmul.f32.gmra.mxu0 %v412
        %v524 = vpop.f32.mrf.mxu0
        %v525 = vadd.f32 0.0, %v524
        %526 = vmatmul.f32.gmra.mxu0 %v415
        %v527 = vpop.f32.mrf.mxu0
        %v528 = vadd.f32 0.0, %v527
        %529 = vmatmul.f32.gmra.mxu0 %v418
        %v530 = vpop.f32.mrf.mxu0
        %v531 = vadd.f32 0.0, %v530
        %532 = vmatmul.f32.gmra.mxu0 %v421
        %v533 = vpop.f32.mrf.mxu0
        %v534 = vadd.f32 0.0, %v533
        %535 = vmatmul.f32.gmra.mxu0 %v424
        %v536 = vpop.f32.mrf.mxu0
        %v537 = vadd.f32 0.0, %v536
        %538 = vmatmul.f32.gmra.mxu0 %v427
        %v539 = vpop.f32.mrf.mxu0
        %v540 = vadd.f32 0.0, %v539
        %541 = vmatmul.f32.gmra.mxu0 %v430
        %v542 = vpop.f32.mrf.mxu0
        %v543 = vadd.f32 0.0, %v542
        %544 = vmatmul.f32.gmra.mxu0 %v433
        %v545 = vpop.f32.mrf.mxu0
        %v546 = vadd.f32 0.0, %v545
        %547 = vmatmul.f32.gmra.mxu0 %v436
        %v548 = vpop.f32.mrf.mxu0
        %v549 = vadd.f32 0.0, %v548
        %550 = vmatmul.f32.gmra.mxu0 %v439
        %v551 = vpop.f32.mrf.mxu0
        %v552 = vadd.f32 0.0, %v551
        %553 = vmatmul.f32.gmra.mxu0 %v442
        %v554 = vpop.f32.mrf.mxu0
        %v555 = vadd.f32 0.0, %v554
        %556 = vmatmul.f32.gmra.mxu0 %v445
        %v557 = vpop.f32.mrf.mxu0
        %v558 = vadd.f32 0.0, %v557
        %559 = vmatmul.f32.gmra.mxu0 %v448
        %v560 = vpop.f32.mrf.mxu0
        %v561 = vadd.f32 0.0, %v560
        %562 = vdwg.mxu0
        %563 = vmatpush.msra.mxu0 0.0
        %564 = vmatpush.msra.mxu0 0.0
        %565 = vmatpush.msra.mxu0 0.0
        %566 = vmatpush.msra.mxu0 0.0
        %567 = vmatpush.msra.mxu0 0.0
        %568 = vmatpush.msra.mxu0 0.0
        %569 = vmatpush.msra.mxu0 0.0
        %570 = vmatpush.msra.mxu0 0.0
        %571 = vmatpush.msra.mxu0 0.0
        %572 = vmatpush.msra.mxu0 0.0
        %573 = vmatpush.msra.mxu0 0.0
        %574 = vmatpush.msra.mxu0 0.0
        %575 = vmatpush.msra.mxu0 0.0
        %576 = vmatpush.msra.mxu0 0.0
        %577 = vmatpush.msra.mxu0 0.0
        %578 = vmatpush.msra.mxu0 %v352
        %579 = vmatmul.f32.gmra.mxu0 %v355
        %v580 = vpop.f32.mrf.mxu0
        %v581 = vadd.f32 0.0, %v580
        %582 = vmatmul.f32.gmra.mxu0 %v358
        %v583 = vpop.f32.mrf.mxu0
        %v584 = vadd.f32 0.0, %v583
        %585 = vmatmul.f32.gmra.mxu0 %v361
        %v586 = vpop.f32.mrf.mxu0
        %v587 = vadd.f32 0.0, %v586
        %588 = vmatmul.f32.gmra.mxu0 %v364
        %v589 = vpop.f32.mrf.mxu0
        %v590 = vadd.f32 0.0, %v589
        %591 = vmatmul.f32.gmra.mxu0 %v367
        %v592 = vpop.f32.mrf.mxu0
        %v593 = vadd.f32 0.0, %v592
        %594 = vmatmul.f32.gmra.mxu0 %v370
        %v595 = vpop.f32.mrf.mxu0
        %v596 = vadd.f32 0.0, %v595
        %597 = vmatmul.f32.gmra.mxu0 %v373
        %v598 = vpop.f32.mrf.mxu0
        %v599 = vadd.f32 0.0, %v598
        %600 = vmatmul.f32.gmra.mxu0 %v376
        %v601 = vpop.f32.mrf.mxu0
        %v602 = vadd.f32 0.0, %v601
        %603 = vmatmul.f32.gmra.mxu0 %v379
        %v604 = vpop.f32.mrf.mxu0
        %v605 = vadd.f32 0.0, %v604
        %606 = vmatmul.f32.gmra.mxu0 %v382
        %v607 = vpop.f32.mrf.mxu0
        %v608 = vadd.f32 0.0, %v607
        %609 = vmatmul.f32.gmra.mxu0 %v385
        %v610 = vpop.f32.mrf.mxu0
        %v611 = vadd.f32 0.0, %v610
        %612 = vmatmul.f32.gmra.mxu0 %v388
        %v613 = vpop.f32.mrf.mxu0
        %v614 = vadd.f32 0.0, %v613
        %615 = vmatmul.f32.gmra.mxu0 %v391
        %v616 = vpop.f32.mrf.mxu0
        %v617 = vadd.f32 0.0, %v616
        %618 = vmatmul.f32.gmra.mxu0 %v394
        %v619 = vpop.f32.mrf.mxu0
        %v620 = vadd.f32 0.0, %v619
        %621 = vmatmul.f32.gmra.mxu0 %v397
        %v622 = vpop.f32.mrf.mxu0
        %v623 = vadd.f32 0.0, %v622
        %624 = vmatmul.f32.gmra.mxu0 %v400
        %v625 = vpop.f32.mrf.mxu0
        %v626 = vadd.f32 0.0, %v625
        %627 = vmatmul.f32.gmra.mxu0 %v403
        %v628 = vpop.f32.mrf.mxu0
        %v629 = vadd.f32 0.0, %v628
        %630 = vmatmul.f32.gmra.mxu0 %v406
        %v631 = vpop.f32.mrf.mxu0
        %v632 = vadd.f32 0.0, %v631
        %633 = vmatmul.f32.gmra.mxu0 %v409
        %v634 = vpop.f32.mrf.mxu0
        %v635 = vadd.f32 0.0, %v634
        %636 = vmatmul.f32.gmra.mxu0 %v412
        %v637 = vpop.f32.mrf.mxu0
        %v638 = vadd.f32 0.0, %v637
        %639 = vmatmul.f32.gmra.mxu0 %v415
        %v640 = vpop.f32.mrf.mxu0
        %v641 = vadd.f32 0.0, %v640
        %642 = vmatmul.f32.gmra.mxu0 %v418
        %v643 = vpop.f32.mrf.mxu0
        %v644 = vadd.f32 0.0, %v643
        %645 = vmatmul.f32.gmra.mxu0 %v421
        %v646 = vpop.f32.mrf.mxu0
        %v647 = vadd.f32 0.0, %v646
        %648 = vmatmul.f32.gmra.mxu0 %v424
        %v649 = vpop.f32.mrf.mxu0
        %v650 = vadd.f32 0.0, %v649
        %651 = vmatmul.f32.gmra.mxu0 %v427
        %v652 = vpop.f32.mrf.mxu0
        %v653 = vadd.f32 0.0, %v652
        %654 = vmatmul.f32.gmra.mxu0 %v430
        %v655 = vpop.f32.mrf.mxu0
        %v656 = vadd.f32 0.0, %v655
        %657 = vmatmul.f32.gmra.mxu0 %v433
        %v658 = vpop.f32.mrf.mxu0
        %v659 = vadd.f32 0.0, %v658
        %660 = vmatmul.f32.gmra.mxu0 %v436
        %v661 = vpop.f32.mrf.mxu0
        %v662 = vadd.f32 0.0, %v661
        %663 = vmatmul.f32.gmra.mxu0 %v439
        %v664 = vpop.f32.mrf.mxu0
        %v665 = vadd.f32 0.0, %v664
        %666 = vmatmul.f32.gmra.mxu0 %v442
        %v667 = vpop.f32.mrf.mxu0
        %v668 = vadd.f32 0.0, %v667
        %669 = vmatmul.f32.gmra.mxu0 %v445
        %v670 = vpop.f32.mrf.mxu0
        %v671 = vadd.f32 0.0, %v670
        %672 = vmatmul.f32.gmra.mxu0 %v448
        %v673 = vpop.f32.mrf.mxu0
        %v674 = vadd.f32 0.0, %v673
        %675 = vdwg.mxu0
        %v677 = vsel %vm353, %v319, 0
        %v680 = vsel %vm353, %v320, 0
        %v683 = vsel %vm353, %v321, 0
        %v686 = vsel %vm353, %v322, 0
        %v689 = vsel %vm353, %v323, 0
        %v692 = vsel %vm353, %v324, 0
        %v695 = vsel %vm353, %v325, 0
        %v698 = vsel %vm353, %v326, 0
        %v701 = vsel %vm353, %v327, 0
        %v704 = vsel %vm353, %v328, 0
        %v707 = vsel %vm353, %v329, 0
        %v710 = vsel %vm353, %v330, 0
        %v713 = vsel %vm353, %v331, 0
        %v716 = vsel %vm353, %v332, 0
        %v719 = vsel %vm353, %v333, 0
        %v722 = vsel %vm353, %v334, 0
        %v725 = vsel %vm353, %v335, 0
        %v728 = vsel %vm353, %v336, 0
        %v731 = vsel %vm353, %v337, 0
        %v734 = vsel %vm353, %v338, 0
        %v737 = vsel %vm353, %v339, 0
        %v740 = vsel %vm353, %v340, 0
        %v743 = vsel %vm353, %v341, 0
        %v746 = vsel %vm353, %v342, 0
        %v749 = vsel %vm353, %v343, 0
        %v752 = vsel %vm353, %v344, 0
        %v755 = vsel %vm353, %v345, 0
        %v758 = vsel %vm353, %v346, 0
        %v761 = vsel %vm353, %v347, 0
        %v764 = vsel %vm353, %v348, 0
        %v767 = vsel %vm353, %v349, 0
        %v770 = vsel %vm353, %v350, 0
        %772 = vmatpush.msra.mxu0 0.0
        %773 = vmatpush.msra.mxu0 0.0
        %774 = vmatpush.msra.mxu0 0.0
        %775 = vmatpush.msra.mxu0 0.0
        %776 = vmatpush.msra.mxu0 0.0
        %777 = vmatpush.msra.mxu0 0.0
        %778 = vmatpush.msra.mxu0 0.0
        %779 = vmatpush.msra.mxu0 0.0
        %780 = vmatpush.msra.mxu0 0.0
        %781 = vmatpush.msra.mxu0 0.0
        %782 = vmatpush.msra.mxu0 0.0
        %783 = vmatpush.msra.mxu0 0.0
        %784 = vmatpush.msra.mxu0 0.0
        %785 = vmatpush.msra.mxu0 0.0
        %786 = vmatpush.msra.mxu0 0.0
        %787 = vmatpush.msra.mxu0 %v351
        %788 = vmatmul.f32.gmra.mxu0 %v677
        %v789 = vpop.f32.mrf.mxu0
        %v790 = vadd.f32 0.0, %v789
        %791 = vmatmul.f32.gmra.mxu0 %v680
        %v792 = vpop.f32.mrf.mxu0
        %v793 = vadd.f32 0.0, %v792
        %794 = vmatmul.f32.gmra.mxu0 %v683
        %v795 = vpop.f32.mrf.mxu0
        %v796 = vadd.f32 0.0, %v795
        %797 = vmatmul.f32.gmra.mxu0 %v686
        %v798 = vpop.f32.mrf.mxu0
        %v799 = vadd.f32 0.0, %v798
        %800 = vmatmul.f32.gmra.mxu0 %v689
        %v801 = vpop.f32.mrf.mxu0
        %v802 = vadd.f32 0.0, %v801
        %803 = vmatmul.f32.gmra.mxu0 %v692
        %v804 = vpop.f32.mrf.mxu0
        %v805 = vadd.f32 0.0, %v804
        %806 = vmatmul.f32.gmra.mxu0 %v695
        %v807 = vpop.f32.mrf.mxu0
        %v808 = vadd.f32 0.0, %v807
        %809 = vmatmul.f32.gmra.mxu0 %v698
        %v810 = vpop.f32.mrf.mxu0
        %v811 = vadd.f32 0.0, %v810
        %812 = vmatmul.f32.gmra.mxu0 %v701
        %v813 = vpop.f32.mrf.mxu0
        %v814 = vadd.f32 0.0, %v813
        %815 = vmatmul.f32.gmra.mxu0 %v704
        %v816 = vpop.f32.mrf.mxu0
        %v817 = vadd.f32 0.0, %v816
        %818 = vmatmul.f32.gmra.mxu0 %v707
        %v819 = vpop.f32.mrf.mxu0
        %v820 = vadd.f32 0.0, %v819
        %821 = vmatmul.f32.gmra.mxu0 %v710
        %v822 = vpop.f32.mrf.mxu0
        %v823 = vadd.f32 0.0, %v822
        %824 = vmatmul.f32.gmra.mxu0 %v713
        %v825 = vpop.f32.mrf.mxu0
        %v826 = vadd.f32 0.0, %v825
        %827 = vmatmul.f32.gmra.mxu0 %v716
        %v828 = vpop.f32.mrf.mxu0
        %v829 = vadd.f32 0.0, %v828
        %830 = vmatmul.f32.gmra.mxu0 %v719
        %v831 = vpop.f32.mrf.mxu0
        %v832 = vadd.f32 0.0, %v831
        %833 = vmatmul.f32.gmra.mxu0 %v722
        %v834 = vpop.f32.mrf.mxu0
        %v835 = vadd.f32 0.0, %v834
        %836 = vmatmul.f32.gmra.mxu0 %v725
        %v837 = vpop.f32.mrf.mxu0
        %v838 = vadd.f32 0.0, %v837
        %839 = vmatmul.f32.gmra.mxu0 %v728
        %v840 = vpop.f32.mrf.mxu0
        %v841 = vadd.f32 0.0, %v840
        %842 = vmatmul.f32.gmra.mxu0 %v731
        %v843 = vpop.f32.mrf.mxu0
        %v844 = vadd.f32 0.0, %v843
        %845 = vmatmul.f32.gmra.mxu0 %v734
        %v846 = vpop.f32.mrf.mxu0
        %v847 = vadd.f32 0.0, %v846
        %848 = vmatmul.f32.gmra.mxu0 %v737
        %v849 = vpop.f32.mrf.mxu0
        %v850 = vadd.f32 0.0, %v849
        %851 = vmatmul.f32.gmra.mxu0 %v740
        %v852 = vpop.f32.mrf.mxu0
        %v853 = vadd.f32 0.0, %v852
        %854 = vmatmul.f32.gmra.mxu0 %v743
        %v855 = vpop.f32.mrf.mxu0
        %v856 = vadd.f32 0.0, %v855
        %857 = vmatmul.f32.gmra.mxu0 %v746
        %v858 = vpop.f32.mrf.mxu0
        %v859 = vadd.f32 0.0, %v858
        %860 = vmatmul.f32.gmra.mxu0 %v749
        %v861 = vpop.f32.mrf.mxu0
        %v862 = vadd.f32 0.0, %v861
        %863 = vmatmul.f32.gmra.mxu0 %v752
        %v864 = vpop.f32.mrf.mxu0
        %v865 = vadd.f32 0.0, %v864
        %866 = vmatmul.f32.gmra.mxu0 %v755
        %v867 = vpop.f32.mrf.mxu0
        %v868 = vadd.f32 0.0, %v867
        %869 = vmatmul.f32.gmra.mxu0 %v758
        %v870 = vpop.f32.mrf.mxu0
        %v871 = vadd.f32 0.0, %v870
        %872 = vmatmul.f32.gmra.mxu0 %v761
        %v873 = vpop.f32.mrf.mxu0
        %v874 = vadd.f32 0.0, %v873
        %875 = vmatmul.f32.gmra.mxu0 %v764
        %v876 = vpop.f32.mrf.mxu0
        %v877 = vadd.f32 0.0, %v876
        %878 = vmatmul.f32.gmra.mxu0 %v767
        %v879 = vpop.f32.mrf.mxu0
        %v880 = vadd.f32 0.0, %v879
        %881 = vmatmul.f32.gmra.mxu0 %v770
        %v882 = vpop.f32.mrf.mxu0
        %v883 = vadd.f32 0.0, %v882
        %884 = vdwg.mxu0
        %885 = vmatpush.msra.mxu0 0.0
        %886 = vmatpush.msra.mxu0 0.0
        %887 = vmatpush.msra.mxu0 0.0
        %888 = vmatpush.msra.mxu0 0.0
        %889 = vmatpush.msra.mxu0 0.0
        %890 = vmatpush.msra.mxu0 0.0
        %891 = vmatpush.msra.mxu0 0.0
        %892 = vmatpush.msra.mxu0 0.0
        %893 = vmatpush.msra.mxu0 0.0
        %894 = vmatpush.msra.mxu0 0.0
        %895 = vmatpush.msra.mxu0 0.0
        %896 = vmatpush.msra.mxu0 0.0
        %897 = vmatpush.msra.mxu0 0.0
        %898 = vmatpush.msra.mxu0 0.0
        %899 = vmatpush.msra.mxu0 0.0
        %900 = vmatpush.msra.mxu0 %v352
        %901 = vmatmul.f32.gmra.mxu0 %v677
        %v902 = vpop.f32.mrf.mxu0
        %v903 = vadd.f32 0.0, %v902
        %904 = vmatmul.f32.gmra.mxu0 %v680
        %v905 = vpop.f32.mrf.mxu0
        %v906 = vadd.f32 0.0, %v905
        %907 = vmatmul.f32.gmra.mxu0 %v683
        %v908 = vpop.f32.mrf.mxu0
        %v909 = vadd.f32 0.0, %v908
        %910 = vmatmul.f32.gmra.mxu0 %v686
        %v911 = vpop.f32.mrf.mxu0
        %v912 = vadd.f32 0.0, %v911
        %913 = vmatmul.f32.gmra.mxu0 %v689
        %v914 = vpop.f32.mrf.mxu0
        %v915 = vadd.f32 0.0, %v914
        %916 = vmatmul.f32.gmra.mxu0 %v692
        %v917 = vpop.f32.mrf.mxu0
        %v918 = vadd.f32 0.0, %v917
        %919 = vmatmul.f32.gmra.mxu0 %v695
        %v920 = vpop.f32.mrf.mxu0
        %v921 = vadd.f32 0.0, %v920
        %922 = vmatmul.f32.gmra.mxu0 %v698
        %v923 = vpop.f32.mrf.mxu0
        %v924 = vadd.f32 0.0, %v923
        %925 = vmatmul.f32.gmra.mxu0 %v701
        %v926 = vpop.f32.mrf.mxu0
        %v927 = vadd.f32 0.0, %v926
        %928 = vmatmul.f32.gmra.mxu0 %v704
        %v929 = vpop.f32.mrf.mxu0
        %v930 = vadd.f32 0.0, %v929
        %931 = vmatmul.f32.gmra.mxu0 %v707
        %v932 = vpop.f32.mrf.mxu0
        %v933 = vadd.f32 0.0, %v932
        %934 = vmatmul.f32.gmra.mxu0 %v710
        %v935 = vpop.f32.mrf.mxu0
        %v936 = vadd.f32 0.0, %v935
        %937 = vmatmul.f32.gmra.mxu0 %v713
        %v938 = vpop.f32.mrf.mxu0
        %v939 = vadd.f32 0.0, %v938
        %940 = vmatmul.f32.gmra.mxu0 %v716
        %v941 = vpop.f32.mrf.mxu0
        %v942 = vadd.f32 0.0, %v941
        %943 = vmatmul.f32.gmra.mxu0 %v719
        %v944 = vpop.f32.mrf.mxu0
        %v945 = vadd.f32 0.0, %v944
        %946 = vmatmul.f32.gmra.mxu0 %v722
        %v947 = vpop.f32.mrf.mxu0
        %v948 = vadd.f32 0.0, %v947
        %949 = vmatmul.f32.gmra.mxu0 %v725
        %v950 = vpop.f32.mrf.mxu0
        %v951 = vadd.f32 0.0, %v950
        %952 = vmatmul.f32.gmra.mxu0 %v728
        %v953 = vpop.f32.mrf.mxu0
        %v954 = vadd.f32 0.0, %v953
        %955 = vmatmul.f32.gmra.mxu0 %v731
        %v956 = vpop.f32.mrf.mxu0
        %v957 = vadd.f32 0.0, %v956
        %958 = vmatmul.f32.gmra.mxu0 %v734
        %v959 = vpop.f32.mrf.mxu0
        %v960 = vadd.f32 0.0, %v959
        %961 = vmatmul.f32.gmra.mxu0 %v737
        %v962 = vpop.f32.mrf.mxu0
        %v963 = vadd.f32 0.0, %v962
        %964 = vmatmul.f32.gmra.mxu0 %v740
        %v965 = vpop.f32.mrf.mxu0
        %v966 = vadd.f32 0.0, %v965
        %967 = vmatmul.f32.gmra.mxu0 %v743
        %v968 = vpop.f32.mrf.mxu0
        %v969 = vadd.f32 0.0, %v968
        %970 = vmatmul.f32.gmra.mxu0 %v746
        %v971 = vpop.f32.mrf.mxu0
        %v972 = vadd.f32 0.0, %v971
        %973 = vmatmul.f32.gmra.mxu0 %v749
        %v974 = vpop.f32.mrf.mxu0
        %v975 = vadd.f32 0.0, %v974
        %976 = vmatmul.f32.gmra.mxu0 %v752
        %v977 = vpop.f32.mrf.mxu0
        %v978 = vadd.f32 0.0, %v977
        %979 = vmatmul.f32.gmra.mxu0 %v755
        %v980 = vpop.f32.mrf.mxu0
        %v981 = vadd.f32 0.0, %v980
        %982 = vmatmul.f32.gmra.mxu0 %v758
        %v983 = vpop.f32.mrf.mxu0
        %v984 = vadd.f32 0.0, %v983
        %985 = vmatmul.f32.gmra.mxu0 %v761
        %v986 = vpop.f32.mrf.mxu0
        %v987 = vadd.f32 0.0, %v986
        %988 = vmatmul.f32.gmra.mxu0 %v764
        %v989 = vpop.f32.mrf.mxu0
        %v990 = vadd.f32 0.0, %v989
        %991 = vmatmul.f32.gmra.mxu0 %v767
        %v992 = vpop.f32.mrf.mxu0
        %v993 = vadd.f32 0.0, %v992
        %994 = vmatmul.f32.gmra.mxu0 %v770
        %v995 = vpop.f32.mrf.mxu0
        %v996 = vadd.f32 0.0, %v995
        %997 = vdwg.mxu0
        %v998 = vmax.f32 %v468, %v581
        %999 = vmax.xlane.f32.xlu0 %v998
        %v1000 = vpop.xlane.xlu0 %999
        %v1001 = vmax.f32 %v471, %v584
        %1002 = vmax.xlane.f32.xlu0 %v1001
        %v1003 = vpop.xlane.xlu0 %1002
        %v1004 = vmax.f32 %v474, %v587
        %1005 = vmax.xlane.f32.xlu0 %v1004
        %v1006 = vpop.xlane.xlu0 %1005
        %v1007 = vmax.f32 %v477, %v590
        %1008 = vmax.xlane.f32.xlu0 %v1007
        %v1009 = vpop.xlane.xlu0 %1008
        %v1010 = vmax.f32 %v480, %v593
        %1011 = vmax.xlane.f32.xlu0 %v1010
        %v1012 = vpop.xlane.xlu0 %1011
        %v1013 = vmax.f32 %v483, %v596
        %1014 = vmax.xlane.f32.xlu0 %v1013
        %v1015 = vpop.xlane.xlu0 %1014
        %v1016 = vmax.f32 %v486, %v599
        %1017 = vmax.xlane.f32.xlu0 %v1016
        %v1018 = vpop.xlane.xlu0 %1017
        %v1019 = vmax.f32 %v489, %v602
        %1020 = vmax.xlane.f32.xlu0 %v1019
        %v1021 = vpop.xlane.xlu0 %1020
        %v1022 = vmax.f32 %v492, %v605
        %1023 = vmax.xlane.f32.xlu0 %v1022
        %v1024 = vpop.xlane.xlu0 %1023
        %v1025 = vmax.f32 %v495, %v608
        %1026 = vmax.xlane.f32.xlu0 %v1025
        %v1027 = vpop.xlane.xlu0 %1026
        %v1028 = vmax.f32 %v498, %v611
        %1029 = vmax.xlane.f32.xlu0 %v1028
        %v1030 = vpop.xlane.xlu0 %1029
        %v1031 = vmax.f32 %v501, %v614
        %1032 = vmax.xlane.f32.xlu0 %v1031
        %v1033 = vpop.xlane.xlu0 %1032
        %v1034 = vmax.f32 %v504, %v617
        %1035 = vmax.xlane.f32.xlu0 %v1034
        %v1036 = vpop.xlane.xlu0 %1035
        %v1037 = vmax.f32 %v507, %v620
        %1038 = vmax.xlane.f32.xlu0 %v1037
        %v1039 = vpop.xlane.xlu0 %1038
        %v1040 = vmax.f32 %v510, %v623
        %1041 = vmax.xlane.f32.xlu0 %v1040
        %v1042 = vpop.xlane.xlu0 %1041
        %v1043 = vmax.f32 %v513, %v626
        %1044 = vmax.xlane.f32.xlu0 %v1043
        %v1045 = vpop.xlane.xlu0 %1044
        %v1046 = vmax.f32 %v516, %v629
        %1047 = vmax.xlane.f32.xlu0 %v1046
        %v1048 = vpop.xlane.xlu0 %1047
        %v1049 = vmax.f32 %v519, %v632
        %1050 = vmax.xlane.f32.xlu0 %v1049
        %v1051 = vpop.xlane.xlu0 %1050
        %v1052 = vmax.f32 %v522, %v635
        %1053 = vmax.xlane.f32.xlu0 %v1052
        %v1054 = vpop.xlane.xlu0 %1053
        %v1055 = vmax.f32 %v525, %v638
        %1056 = vmax.xlane.f32.xlu0 %v1055
        %v1057 = vpop.xlane.xlu0 %1056
        %v1058 = vmax.f32 %v528, %v641
        %1059 = vmax.xlane.f32.xlu0 %v1058
        %v1060 = vpop.xlane.xlu0 %1059
        %v1061 = vmax.f32 %v531, %v644
        %1062 = vmax.xlane.f32.xlu0 %v1061
        %v1063 = vpop.xlane.xlu0 %1062
        %v1064 = vmax.f32 %v534, %v647
        %1065 = vmax.xlane.f32.xlu0 %v1064
        %v1066 = vpop.xlane.xlu0 %1065
        %v1067 = vmax.f32 %v537, %v650
        %1068 = vmax.xlane.f32.xlu0 %v1067
        %v1069 = vpop.xlane.xlu0 %1068
        %v1070 = vmax.f32 %v540, %v653
        %1071 = vmax.xlane.f32.xlu0 %v1070
        %v1072 = vpop.xlane.xlu0 %1071
        %v1073 = vmax.f32 %v543, %v656
        %1074 = vmax.xlane.f32.xlu0 %v1073
        %v1075 = vpop.xlane.xlu0 %1074
        %v1076 = vmax.f32 %v546, %v659
        %1077 = vmax.xlane.f32.xlu0 %v1076
        %v1078 = vpop.xlane.xlu0 %1077
        %v1079 = vmax.f32 %v549, %v662
        %1080 = vmax.xlane.f32.xlu0 %v1079
        %v1081 = vpop.xlane.xlu0 %1080
        %v1082 = vmax.f32 %v552, %v665
        %1083 = vmax.xlane.f32.xlu0 %v1082
        %v1084 = vpop.xlane.xlu0 %1083
        %v1085 = vmax.f32 %v555, %v668
        %1086 = vmax.xlane.f32.xlu0 %v1085
        %v1087 = vpop.xlane.xlu0 %1086
        %v1088 = vmax.f32 %v558, %v671
        %1089 = vmax.xlane.f32.xlu0 %v1088
        %v1090 = vpop.xlane.xlu0 %1089
        %v1091 = vmax.f32 %v561, %v674
        %1092 = vmax.xlane.f32.xlu0 %v1091
        %v1093 = vpop.xlane.xlu0 %1092
        %v1094 = vmax.f32 %v1000, -3.4028235e+38
        %v1095 = vmax.f32 %v1003, -3.4028235e+38
        %v1096 = vmax.f32 %v1006, -3.4028235e+38
        %v1097 = vmax.f32 %v1009, -3.4028235e+38
        %v1098 = vmax.f32 %v1012, -3.4028235e+38
        %v1099 = vmax.f32 %v1015, -3.4028235e+38
        %v1100 = vmax.f32 %v1018, -3.4028235e+38
        %v1101 = vmax.f32 %v1021, -3.4028235e+38
        %v1102 = vmax.f32 %v1024, -3.4028235e+38
        %v1103 = vmax.f32 %v1027, -3.4028235e+38
        %v1104 = vmax.f32 %v1030, -3.4028235e+38
        %v1105 = vmax.f32 %v1033, -3.4028235e+38
        %v1106 = vmax.f32 %v1036, -3.4028235e+38
        %v1107 = vmax.f32 %v1039, -3.4028235e+38
        %v1108 = vmax.f32 %v1042, -3.4028235e+38
        %v1109 = vmax.f32 %v1045, -3.4028235e+38
        %v1110 = vmax.f32 %v1048, -3.4028235e+38
        %v1111 = vmax.f32 %v1051, -3.4028235e+38
        %v1112 = vmax.f32 %v1054, -3.4028235e+38
        %v1113 = vmax.f32 %v1057, -3.4028235e+38
        %v1114 = vmax.f32 %v1060, -3.4028235e+38
        %v1115 = vmax.f32 %v1063, -3.4028235e+38
        %v1116 = vmax.f32 %v1066, -3.4028235e+38
        %v1117 = vmax.f32 %v1069, -3.4028235e+38
        %v1118 = vmax.f32 %v1072, -3.4028235e+38
        %v1119 = vmax.f32 %v1075, -3.4028235e+38
        %v1120 = vmax.f32 %v1078, -3.4028235e+38
        %v1121 = vmax.f32 %v1081, -3.4028235e+38
        %v1122 = vmax.f32 %v1084, -3.4028235e+38
        %v1123 = vmax.f32 %v1087, -3.4028235e+38
        %v1124 = vmax.f32 %v1090, -3.4028235e+38
        %v1125 = vmax.f32 %v1093, -3.4028235e+38
        %v1126 = vmax.f32 %v790, %v903
        %1127 = vmax.xlane.f32.xlu0 %v1126
        %v1128 = vpop.xlane.xlu0 %1127
        %v1129 = vmax.f32 %v793, %v906
        %1130 = vmax.xlane.f32.xlu0 %v1129
        %v1131 = vpop.xlane.xlu0 %1130
        %v1132 = vmax.f32 %v796, %v909
        %1133 = vmax.xlane.f32.xlu0 %v1132
        %v1134 = vpop.xlane.xlu0 %1133
        %v1135 = vmax.f32 %v799, %v912
        %1136 = vmax.xlane.f32.xlu0 %v1135
        %v1137 = vpop.xlane.xlu0 %1136
        %v1138 = vmax.f32 %v802, %v915
        %1139 = vmax.xlane.f32.xlu0 %v1138
        %v1140 = vpop.xlane.xlu0 %1139
        %v1141 = vmax.f32 %v805, %v918
        %1142 = vmax.xlane.f32.xlu0 %v1141
        %v1143 = vpop.xlane.xlu0 %1142
        %v1144 = vmax.f32 %v808, %v921
        %1145 = vmax.xlane.f32.xlu0 %v1144
        %v1146 = vpop.xlane.xlu0 %1145
        %v1147 = vmax.f32 %v811, %v924
        %1148 = vmax.xlane.f32.xlu0 %v1147
        %v1149 = vpop.xlane.xlu0 %1148
        %v1150 = vmax.f32 %v814, %v927
        %1151 = vmax.xlane.f32.xlu0 %v1150
        %v1152 = vpop.xlane.xlu0 %1151
        %v1153 = vmax.f32 %v817, %v930
        %1154 = vmax.xlane.f32.xlu0 %v1153
        %v1155 = vpop.xlane.xlu0 %1154
        %v1156 = vmax.f32 %v820, %v933
        %1157 = vmax.xlane.f32.xlu0 %v1156
        %v1158 = vpop.xlane.xlu0 %1157
        %v1159 = vmax.f32 %v823, %v936
        %1160 = vmax.xlane.f32.xlu0 %v1159
        %v1161 = vpop.xlane.xlu0 %1160
        %v1162 = vmax.f32 %v826, %v939
        %1163 = vmax.xlane.f32.xlu0 %v1162
        %v1164 = vpop.xlane.xlu0 %1163
        %v1165 = vmax.f32 %v829, %v942
        %1166 = vmax.xlane.f32.xlu0 %v1165
        %v1167 = vpop.xlane.xlu0 %1166
        %v1168 = vmax.f32 %v832, %v945
        %1169 = vmax.xlane.f32.xlu0 %v1168
        %v1170 = vpop.xlane.xlu0 %1169
        %v1171 = vmax.f32 %v835, %v948
        %1172 = vmax.xlane.f32.xlu0 %v1171
        %v1173 = vpop.xlane.xlu0 %1172
        %v1174 = vmax.f32 %v838, %v951
        %1175 = vmax.xlane.f32.xlu0 %v1174
        %v1176 = vpop.xlane.xlu0 %1175
        %v1177 = vmax.f32 %v841, %v954
        %1178 = vmax.xlane.f32.xlu0 %v1177
        %v1179 = vpop.xlane.xlu0 %1178
        %v1180 = vmax.f32 %v844, %v957
        %1181 = vmax.xlane.f32.xlu0 %v1180
        %v1182 = vpop.xlane.xlu0 %1181
        %v1183 = vmax.f32 %v847, %v960
        %1184 = vmax.xlane.f32.xlu0 %v1183
        %v1185 = vpop.xlane.xlu0 %1184
        %v1186 = vmax.f32 %v850, %v963
        %1187 = vmax.xlane.f32.xlu0 %v1186
        %v1188 = vpop.xlane.xlu0 %1187
        %v1189 = vmax.f32 %v853, %v966
        %1190 = vmax.xlane.f32.xlu0 %v1189
        %v1191 = vpop.xlane.xlu0 %1190
        %v1192 = vmax.f32 %v856, %v969
        %1193 = vmax.xlane.f32.xlu0 %v1192
        %v1194 = vpop.xlane.xlu0 %1193
        %v1195 = vmax.f32 %v859, %v972
        %1196 = vmax.xlane.f32.xlu0 %v1195
        %v1197 = vpop.xlane.xlu0 %1196
        %v1198 = vmax.f32 %v862, %v975
        %1199 = vmax.xlane.f32.xlu0 %v1198
        %v1200 = vpop.xlane.xlu0 %1199
        %v1201 = vmax.f32 %v865, %v978
        %1202 = vmax.xlane.f32.xlu0 %v1201
        %v1203 = vpop.xlane.xlu0 %1202
        %v1204 = vmax.f32 %v868, %v981
        %1205 = vmax.xlane.f32.xlu0 %v1204
        %v1206 = vpop.xlane.xlu0 %1205
        %v1207 = vmax.f32 %v871, %v984
        %1208 = vmax.xlane.f32.xlu0 %v1207
        %v1209 = vpop.xlane.xlu0 %1208
        %v1210 = vmax.f32 %v874, %v987
        %1211 = vmax.xlane.f32.xlu0 %v1210
        %v1212 = vpop.xlane.xlu0 %1211
        %v1213 = vmax.f32 %v877, %v990
        %1214 = vmax.xlane.f32.xlu0 %v1213
        %v1215 = vpop.xlane.xlu0 %1214
        %v1216 = vmax.f32 %v880, %v993
        %1217 = vmax.xlane.f32.xlu0 %v1216
        %v1218 = vpop.xlane.xlu0 %1217
        %v1219 = vmax.f32 %v883, %v996
        %1220 = vmax.xlane.f32.xlu0 %v1219
        %v1221 = vpop.xlane.xlu0 %1220
        %v1222 = vmax.f32 %v1128, -3.4028235e+38
        %v1223 = vmax.f32 %v1131, -3.4028235e+38
        %v1224 = vmax.f32 %v1134, -3.4028235e+38
        %v1225 = vmax.f32 %v1137, -3.4028235e+38
        %v1226 = vmax.f32 %v1140, -3.4028235e+38
        %v1227 = vmax.f32 %v1143, -3.4028235e+38
        %v1228 = vmax.f32 %v1146, -3.4028235e+38
        %v1229 = vmax.f32 %v1149, -3.4028235e+38
        %v1230 = vmax.f32 %v1152, -3.4028235e+38
        %v1231 = vmax.f32 %v1155, -3.4028235e+38
        %v1232 = vmax.f32 %v1158, -3.4028235e+38
        %v1233 = vmax.f32 %v1161, -3.4028235e+38
        %v1234 = vmax.f32 %v1164, -3.4028235e+38
        %v1235 = vmax.f32 %v1167, -3.4028235e+38
        %v1236 = vmax.f32 %v1170, -3.4028235e+38
        %v1237 = vmax.f32 %v1173, -3.4028235e+38
        %v1238 = vmax.f32 %v1176, -3.4028235e+38
        %v1239 = vmax.f32 %v1179, -3.4028235e+38
        %v1240 = vmax.f32 %v1182, -3.4028235e+38
        %v1241 = vmax.f32 %v1185, -3.4028235e+38
        %v1242 = vmax.f32 %v1188, -3.4028235e+38
        %v1243 = vmax.f32 %v1191, -3.4028235e+38
        %v1244 = vmax.f32 %v1194, -3.4028235e+38
        %v1245 = vmax.f32 %v1197, -3.4028235e+38
        %v1246 = vmax.f32 %v1200, -3.4028235e+38
        %v1247 = vmax.f32 %v1203, -3.4028235e+38
        %v1248 = vmax.f32 %v1206, -3.4028235e+38
        %v1249 = vmax.f32 %v1209, -3.4028235e+38
        %v1250 = vmax.f32 %v1212, -3.4028235e+38
        %v1251 = vmax.f32 %v1215, -3.4028235e+38
        %v1252 = vmax.f32 %v1218, -3.4028235e+38
        %v1253 = vmax.f32 %v1221, -3.4028235e+38
        %v1254 = vsub.f32 0.0, %v1094
        %v1255 = vsub.f32 0.0, %v1095
        %v1256 = vsub.f32 0.0, %v1096
        %v1257 = vsub.f32 0.0, %v1097
        %v1258 = vsub.f32 0.0, %v1098
        %v1259 = vsub.f32 0.0, %v1099
        %v1260 = vsub.f32 0.0, %v1100
        %v1261 = vsub.f32 0.0, %v1101
        %v1262 = vsub.f32 0.0, %v1102
        %v1263 = vsub.f32 0.0, %v1103
        %v1264 = vsub.f32 0.0, %v1104
        %v1265 = vsub.f32 0.0, %v1105
        %v1266 = vsub.f32 0.0, %v1106
        %v1267 = vsub.f32 0.0, %v1107
        %v1268 = vsub.f32 0.0, %v1108
        %v1269 = vsub.f32 0.0, %v1109
        %v1270 = vsub.f32 0.0, %v1110
        %v1271 = vsub.f32 0.0, %v1111
        %v1272 = vsub.f32 0.0, %v1112
        %v1273 = vsub.f32 0.0, %v1113
        %v1274 = vsub.f32 0.0, %v1114
        %v1275 = vsub.f32 0.0, %v1115
        %v1276 = vsub.f32 0.0, %v1116
        %v1277 = vsub.f32 0.0, %v1117
        %v1278 = vsub.f32 0.0, %v1118
        %v1279 = vsub.f32 0.0, %v1119
        %v1280 = vsub.f32 0.0, %v1120
        %v1281 = vsub.f32 0.0, %v1121
        %v1282 = vsub.f32 0.0, %v1122
        %v1283 = vsub.f32 0.0, %v1123
        %v1284 = vsub.f32 0.0, %v1124
        %v1285 = vsub.f32 0.0, %v1125
        %v1286 = vsub.f32 0.0, %v1222
        %v1287 = vsub.f32 0.0, %v1223
        %v1288 = vsub.f32 0.0, %v1224
        %v1289 = vsub.f32 0.0, %v1225
        %v1290 = vsub.f32 0.0, %v1226
        %v1291 = vsub.f32 0.0, %v1227
        %v1292 = vsub.f32 0.0, %v1228
        %v1293 = vsub.f32 0.0, %v1229
        %v1294 = vsub.f32 0.0, %v1230
        %v1295 = vsub.f32 0.0, %v1231
        %v1296 = vsub.f32 0.0, %v1232
        %v1297 = vsub.f32 0.0, %v1233
        %v1298 = vsub.f32 0.0, %v1234
        %v1299 = vsub.f32 0.0, %v1235
        %v1300 = vsub.f32 0.0, %v1236
        %v1301 = vsub.f32 0.0, %v1237
        %v1302 = vsub.f32 0.0, %v1238
        %v1303 = vsub.f32 0.0, %v1239
        %v1304 = vsub.f32 0.0, %v1240
        %v1305 = vsub.f32 0.0, %v1241
        %v1306 = vsub.f32 0.0, %v1242
        %v1307 = vsub.f32 0.0, %v1243
        %v1308 = vsub.f32 0.0, %v1244
        %v1309 = vsub.f32 0.0, %v1245
        %v1310 = vsub.f32 0.0, %v1246
        %v1311 = vsub.f32 0.0, %v1247
        %v1312 = vsub.f32 0.0, %v1248
        %v1313 = vsub.f32 0.0, %v1249
        %v1314 = vsub.f32 0.0, %v1250
        %v1315 = vsub.f32 0.0, %v1251
        %v1316 = vsub.f32 0.0, %v1252
        %v1317 = vsub.f32 0.0, %v1253
        %vm1318 = vcmp.lt.f32.partialorder %v1254, 482.0
        %vm1319 = vcmp.lt.f32.partialorder %v1255, 482.0
        %vm1320 = vcmp.lt.f32.partialorder %v1256, 482.0
        %vm1321 = vcmp.lt.f32.partialorder %v1257, 482.0
        %vm1322 = vcmp.lt.f32.partialorder %v1258, 482.0
        %vm1323 = vcmp.lt.f32.partialorder %v1259, 482.0
        %vm1324 = vcmp.lt.f32.partialorder %v1260, 482.0
        %vm1325 = vcmp.lt.f32.partialorder %v1261, 482.0
        %vm1326 = vcmp.lt.f32.partialorder %v1262, 482.0
        %vm1327 = vcmp.lt.f32.partialorder %v1263, 482.0
        %vm1328 = vcmp.lt.f32.partialorder %v1264, 482.0
        %vm1329 = vcmp.lt.f32.partialorder %v1265, 482.0
        %vm1330 = vcmp.lt.f32.partialorder %v1266, 482.0
        %vm1331 = vcmp.lt.f32.partialorder %v1267, 482.0
        %vm1332 = vcmp.lt.f32.partialorder %v1268, 482.0
        %vm1333 = vcmp.lt.f32.partialorder %v1269, 482.0
        %vm1334 = vcmp.lt.f32.partialorder %v1270, 482.0
        %vm1335 = vcmp.lt.f32.partialorder %v1271, 482.0
        %vm1336 = vcmp.lt.f32.partialorder %v1272, 482.0
        %vm1337 = vcmp.lt.f32.partialorder %v1273, 482.0
        %vm1338 = vcmp.lt.f32.partialorder %v1274, 482.0
        %vm1339 = vcmp.lt.f32.partialorder %v1275, 482.0
        %vm1340 = vcmp.lt.f32.partialorder %v1276, 482.0
        %vm1341 = vcmp.lt.f32.partialorder %v1277, 482.0
        %vm1342 = vcmp.lt.f32.partialorder %v1278, 482.0
        %vm1343 = vcmp.lt.f32.partialorder %v1279, 482.0
        %vm1344 = vcmp.lt.f32.partialorder %v1280, 482.0
        %vm1345 = vcmp.lt.f32.partialorder %v1281, 482.0
        %vm1346 = vcmp.lt.f32.partialorder %v1282, 482.0
        %vm1347 = vcmp.lt.f32.partialorder %v1283, 482.0
        %vm1348 = vcmp.lt.f32.partialorder %v1284, 482.0
        %vm1349 = vcmp.lt.f32.partialorder %v1285, 482.0
        %v1350 = vmax.f32 %v1254, 0.0
        %v1351 = vmax.f32 %v1255, 0.0
        %v1352 = vmax.f32 %v1256, 0.0
        %v1353 = vmax.f32 %v1257, 0.0
        %v1354 = vmax.f32 %v1258, 0.0
        %v1355 = vmax.f32 %v1259, 0.0
        %v1356 = vmax.f32 %v1260, 0.0
        %v1357 = vmax.f32 %v1261, 0.0
        %v1358 = vmax.f32 %v1262, 0.0
        %v1359 = vmax.f32 %v1263, 0.0
        %v1360 = vmax.f32 %v1264, 0.0
        %v1361 = vmax.f32 %v1265, 0.0
        %v1362 = vmax.f32 %v1266, 0.0
        %v1363 = vmax.f32 %v1267, 0.0
        %v1364 = vmax.f32 %v1268, 0.0
        %v1365 = vmax.f32 %v1269, 0.0
        %v1366 = vmax.f32 %v1270, 0.0
        %v1367 = vmax.f32 %v1271, 0.0
        %v1368 = vmax.f32 %v1272, 0.0
        %v1369 = vmax.f32 %v1273, 0.0
        %v1370 = vmax.f32 %v1274, 0.0
        %v1371 = vmax.f32 %v1275, 0.0
        %v1372 = vmax.f32 %v1276, 0.0
        %v1373 = vmax.f32 %v1277, 0.0
        %v1374 = vmax.f32 %v1278, 0.0
        %v1375 = vmax.f32 %v1279, 0.0
        %v1376 = vmax.f32 %v1280, 0.0
        %v1377 = vmax.f32 %v1281, 0.0
        %v1378 = vmax.f32 %v1282, 0.0
        %v1379 = vmax.f32 %v1283, 0.0
        %v1380 = vmax.f32 %v1284, 0.0
        %v1381 = vmax.f32 %v1285, 0.0
        %v1382 = vsel %vm1318, %v1350, 0.0
        %v1383 = vsel %vm1319, %v1351, 0.0
        %v1384 = vsel %vm1320, %v1352, 0.0
        %v1385 = vsel %vm1321, %v1353, 0.0
        %v1386 = vsel %vm1322, %v1354, 0.0
        %v1387 = vsel %vm1323, %v1355, 0.0
        %v1388 = vsel %vm1324, %v1356, 0.0
        %v1389 = vsel %vm1325, %v1357, 0.0
        %v1390 = vsel %vm1326, %v1358, 0.0
        %v1391 = vsel %vm1327, %v1359, 0.0
        %v1392 = vsel %vm1328, %v1360, 0.0
        %v1393 = vsel %vm1329, %v1361, 0.0
        %v1394 = vsel %vm1330, %v1362, 0.0
        %v1395 = vsel %vm1331, %v1363, 0.0
        %v1396 = vsel %vm1332, %v1364, 0.0
        %v1397 = vsel %vm1333, %v1365, 0.0
        %v1398 = vsel %vm1334, %v1366, 0.0
        %v1399 = vsel %vm1335, %v1367, 0.0
        %v1400 = vsel %vm1336, %v1368, 0.0
        %v1401 = vsel %vm1337, %v1369, 0.0
        %v1402 = vsel %vm1338, %v1370, 0.0
        %v1403 = vsel %vm1339, %v1371, 0.0
        %v1404 = vsel %vm1340, %v1372, 0.0
        %v1405 = vsel %vm1341, %v1373, 0.0
        %v1406 = vsel %vm1342, %v1374, 0.0
        %v1407 = vsel %vm1343, %v1375, 0.0
        %v1408 = vsel %vm1344, %v1376, 0.0
        %v1409 = vsel %vm1345, %v1377, 0.0
        %v1410 = vsel %vm1346, %v1378, 0.0
        %v1411 = vsel %vm1347, %v1379, 0.0
        %v1412 = vsel %vm1348, %v1380, 0.0
        %v1413 = vsel %vm1349, %v1381, 0.0
        %vm1414 = vcmp.lt.f32.partialorder %v1286, 482.0
        %vm1415 = vcmp.lt.f32.partialorder %v1287, 482.0
        %vm1416 = vcmp.lt.f32.partialorder %v1288, 482.0
        %vm1417 = vcmp.lt.f32.partialorder %v1289, 482.0
        %vm1418 = vcmp.lt.f32.partialorder %v1290, 482.0
        %vm1419 = vcmp.lt.f32.partialorder %v1291, 482.0
        %vm1420 = vcmp.lt.f32.partialorder %v1292, 482.0
        %vm1421 = vcmp.lt.f32.partialorder %v1293, 482.0
        %vm1422 = vcmp.lt.f32.partialorder %v1294, 482.0
        %vm1423 = vcmp.lt.f32.partialorder %v1295, 482.0
        %vm1424 = vcmp.lt.f32.partialorder %v1296, 482.0
        %vm1425 = vcmp.lt.f32.partialorder %v1297, 482.0
        %vm1426 = vcmp.lt.f32.partialorder %v1298, 482.0
        %vm1427 = vcmp.lt.f32.partialorder %v1299, 482.0
        %vm1428 = vcmp.lt.f32.partialorder %v1300, 482.0
        %vm1429 = vcmp.lt.f32.partialorder %v1301, 482.0
        %vm1430 = vcmp.lt.f32.partialorder %v1302, 482.0
        %vm1431 = vcmp.lt.f32.partialorder %v1303, 482.0
        %vm1432 = vcmp.lt.f32.partialorder %v1304, 482.0
        %vm1433 = vcmp.lt.f32.partialorder %v1305, 482.0
        %vm1434 = vcmp.lt.f32.partialorder %v1306, 482.0
        %vm1435 = vcmp.lt.f32.partialorder %v1307, 482.0
        %vm1436 = vcmp.lt.f32.partialorder %v1308, 482.0
        %vm1437 = vcmp.lt.f32.partialorder %v1309, 482.0
        %vm1438 = vcmp.lt.f32.partialorder %v1310, 482.0
        %vm1439 = vcmp.lt.f32.partialorder %v1311, 482.0
        %vm1440 = vcmp.lt.f32.partialorder %v1312, 482.0
        %vm1441 = vcmp.lt.f32.partialorder %v1313, 482.0
        %vm1442 = vcmp.lt.f32.partialorder %v1314, 482.0
        %vm1443 = vcmp.lt.f32.partialorder %v1315, 482.0
        %vm1444 = vcmp.lt.f32.partialorder %v1316, 482.0
        %vm1445 = vcmp.lt.f32.partialorder %v1317, 482.0
        %v1446 = vmax.f32 %v1286, 0.0
        %v1447 = vmax.f32 %v1287, 0.0
        %v1448 = vmax.f32 %v1288, 0.0
        %v1449 = vmax.f32 %v1289, 0.0
        %v1450 = vmax.f32 %v1290, 0.0
        %v1451 = vmax.f32 %v1291, 0.0
        %v1452 = vmax.f32 %v1292, 0.0
        %v1453 = vmax.f32 %v1293, 0.0
        %v1454 = vmax.f32 %v1294, 0.0
        %v1455 = vmax.f32 %v1295, 0.0
        %v1456 = vmax.f32 %v1296, 0.0
        %v1457 = vmax.f32 %v1297, 0.0
        %v1458 = vmax.f32 %v1298, 0.0
        %v1459 = vmax.f32 %v1299, 0.0
        %v1460 = vmax.f32 %v1300, 0.0
        %v1461 = vmax.f32 %v1301, 0.0
        %v1462 = vmax.f32 %v1302, 0.0
        %v1463 = vmax.f32 %v1303, 0.0
        %v1464 = vmax.f32 %v1304, 0.0
        %v1465 = vmax.f32 %v1305, 0.0
        %v1466 = vmax.f32 %v1306, 0.0
        %v1467 = vmax.f32 %v1307, 0.0
        %v1468 = vmax.f32 %v1308, 0.0
        %v1469 = vmax.f32 %v1309, 0.0
        %v1470 = vmax.f32 %v1310, 0.0
        %v1471 = vmax.f32 %v1311, 0.0
        %v1472 = vmax.f32 %v1312, 0.0
        %v1473 = vmax.f32 %v1313, 0.0
        %v1474 = vmax.f32 %v1314, 0.0
        %v1475 = vmax.f32 %v1315, 0.0
        %v1476 = vmax.f32 %v1316, 0.0
        %v1477 = vmax.f32 %v1317, 0.0
        %v1478 = vsel %vm1414, %v1446, 0.0
        %v1479 = vsel %vm1415, %v1447, 0.0
        %v1480 = vsel %vm1416, %v1448, 0.0
        %v1481 = vsel %vm1417, %v1449, 0.0
        %v1482 = vsel %vm1418, %v1450, 0.0
        %v1483 = vsel %vm1419, %v1451, 0.0
        %v1484 = vsel %vm1420, %v1452, 0.0
        %v1485 = vsel %vm1421, %v1453, 0.0
        %v1486 = vsel %vm1422, %v1454, 0.0
        %v1487 = vsel %vm1423, %v1455, 0.0
        %v1488 = vsel %vm1424, %v1456, 0.0
        %v1489 = vsel %vm1425, %v1457, 0.0
        %v1490 = vsel %vm1426, %v1458, 0.0
        %v1491 = vsel %vm1427, %v1459, 0.0
        %v1492 = vsel %vm1428, %v1460, 0.0
        %v1493 = vsel %vm1429, %v1461, 0.0
        %v1494 = vsel %vm1430, %v1462, 0.0
        %v1495 = vsel %vm1431, %v1463, 0.0
        %v1496 = vsel %vm1432, %v1464, 0.0
        %v1497 = vsel %vm1433, %v1465, 0.0
        %v1498 = vsel %vm1434, %v1466, 0.0
        %v1499 = vsel %vm1435, %v1467, 0.0
        %v1500 = vsel %vm1436, %v1468, 0.0
        %v1501 = vsel %vm1437, %v1469, 0.0
        %v1502 = vsel %vm1438, %v1470, 0.0
        %v1503 = vsel %vm1439, %v1471, 0.0
        %v1504 = vsel %vm1440, %v1472, 0.0
        %v1505 = vsel %vm1441, %v1473, 0.0
        %v1506 = vsel %vm1442, %v1474, 0.0
        %v1507 = vsel %vm1443, %v1475, 0.0
        %v1508 = vsel %vm1444, %v1476, 0.0
        %v1509 = vsel %vm1445, %v1477, 0.0
        %v1510 = vadd.f32 %v1382, %v1478
        %v1511 = vadd.f32 %v1383, %v1479
        %v1512 = vadd.f32 %v1384, %v1480
        %v1513 = vadd.f32 %v1385, %v1481
        %v1514 = vadd.f32 %v1386, %v1482
        %v1515 = vadd.f32 %v1387, %v1483
        %v1516 = vadd.f32 %v1388, %v1484
        %v1517 = vadd.f32 %v1389, %v1485
        %v1518 = vadd.f32 %v1390, %v1486
        %v1519 = vadd.f32 %v1391, %v1487
        %v1520 = vadd.f32 %v1392, %v1488
        %v1521 = vadd.f32 %v1393, %v1489
        %v1522 = vadd.f32 %v1394, %v1490
        %v1523 = vadd.f32 %v1395, %v1491
        %v1524 = vadd.f32 %v1396, %v1492
        %v1525 = vadd.f32 %v1397, %v1493
        %v1526 = vadd.f32 %v1398, %v1494
        %v1527 = vadd.f32 %v1399, %v1495
        %v1528 = vadd.f32 %v1400, %v1496
        %v1529 = vadd.f32 %v1401, %v1497
        %v1530 = vadd.f32 %v1402, %v1498
        %v1531 = vadd.f32 %v1403, %v1499
        %v1532 = vadd.f32 %v1404, %v1500
        %v1533 = vadd.f32 %v1405, %v1501
        %v1534 = vadd.f32 %v1406, %v1502
        %v1535 = vadd.f32 %v1407, %v1503
        %v1536 = vadd.f32 %v1408, %v1504
        %v1537 = vadd.f32 %v1409, %v1505
        %v1538 = vadd.f32 %v1410, %v1506
        %v1539 = vadd.f32 %v1411, %v1507
        %v1540 = vadd.f32 %v1412, %v1508
        %v1541 = vadd.f32 %v1413, %v1509
        %1574 = vrot.lane.b32.xlu0 %v235, 127
        %v1575 = vpop.permute.xlu0 %1574
        %1576 = vrot.lane.b32.xlu0 %v236, 127
        %v1577 = vpop.permute.xlu0 %1576
        %1578 = vrot.lane.b32.xlu0 %v237, 127
        %v1579 = vpop.permute.xlu0 %1578
        %1580 = vrot.lane.b32.xlu0 %v238, 127
        %v1581 = vpop.permute.xlu0 %1580
        %1582 = vrot.lane.b32.xlu0 %v239, 127
        %v1583 = vpop.permute.xlu0 %1582
        %1584 = vrot.lane.b32.xlu0 %v240, 127
        %v1585 = vpop.permute.xlu0 %1584
        %1586 = vrot.lane.b32.xlu0 %v241, 127
        %v1587 = vpop.permute.xlu0 %1586
        %1588 = vrot.lane.b32.xlu0 %v242, 127
        %v1589 = vpop.permute.xlu0 %1588
        %1590 = vrot.lane.b32.xlu0 %v243, 127
        %v1591 = vpop.permute.xlu0 %1590
        %1592 = vrot.lane.b32.xlu0 %v244, 127
        %v1593 = vpop.permute.xlu0 %1592
        %1594 = vrot.lane.b32.xlu0 %v245, 127
        %v1595 = vpop.permute.xlu0 %1594
        %1596 = vrot.lane.b32.xlu0 %v246, 127
        %v1597 = vpop.permute.xlu0 %1596
        %1598 = vrot.lane.b32.xlu0 %v247, 127
        %v1599 = vpop.permute.xlu0 %1598
        %1600 = vrot.lane.b32.xlu0 %v248, 127
        %v1601 = vpop.permute.xlu0 %1600
        %1602 = vrot.lane.b32.xlu0 %v249, 127
        %v1603 = vpop.permute.xlu0 %1602
        %1604 = vrot.lane.b32.xlu0 %v250, 127
        %v1605 = vpop.permute.xlu0 %1604
        %1606 = vrot.lane.b32.xlu0 %v267, 127
        %v1607 = vpop.permute.xlu0 %1606
        %1608 = vrot.lane.b32.xlu0 %v268, 127
        %v1609 = vpop.permute.xlu0 %1608
        %1610 = vrot.lane.b32.xlu0 %v269, 127
        %v1611 = vpop.permute.xlu0 %1610
        %1612 = vrot.lane.b32.xlu0 %v270, 127
        %v1613 = vpop.permute.xlu0 %1612
        %1614 = vrot.lane.b32.xlu0 %v271, 127
        %v1615 = vpop.permute.xlu0 %1614
        %1616 = vrot.lane.b32.xlu0 %v272, 127
        %v1617 = vpop.permute.xlu0 %1616
        %1618 = vrot.lane.b32.xlu0 %v273, 127
        %v1619 = vpop.permute.xlu0 %1618
        %1620 = vrot.lane.b32.xlu0 %v274, 127
        %v1621 = vpop.permute.xlu0 %1620
        %1622 = vrot.lane.b32.xlu0 %v275, 127
        %v1623 = vpop.permute.xlu0 %1622
        %1624 = vrot.lane.b32.xlu0 %v276, 127
        %v1625 = vpop.permute.xlu0 %1624
        %1626 = vrot.lane.b32.xlu0 %v277, 127
        %v1627 = vpop.permute.xlu0 %1626
        %1628 = vrot.lane.b32.xlu0 %v278, 127
        %v1629 = vpop.permute.xlu0 %1628
        %1630 = vrot.lane.b32.xlu0 %v279, 127
        %v1631 = vpop.permute.xlu0 %1630
        %1632 = vrot.lane.b32.xlu0 %v280, 127
        %v1633 = vpop.permute.xlu0 %1632
        %1634 = vrot.lane.b32.xlu0 %v281, 127
        %v1635 = vpop.permute.xlu0 %1634
        %1636 = vrot.lane.b32.xlu0 %v282, 127
        %v1637 = vpop.permute.xlu0 %1636
        %v1670 = vsub.f32 %v235, %v1575
        %v1671 = vsub.f32 %v236, %v1577
        %v1672 = vsub.f32 %v237, %v1579
        %v1673 = vsub.f32 %v238, %v1581
        %v1674 = vsub.f32 %v239, %v1583
        %v1675 = vsub.f32 %v240, %v1585
        %v1676 = vsub.f32 %v241, %v1587
        %v1677 = vsub.f32 %v242, %v1589
        %v1678 = vsub.f32 %v243, %v1591
        %v1679 = vsub.f32 %v244, %v1593
        %v1680 = vsub.f32 %v245, %v1595
        %v1681 = vsub.f32 %v246, %v1597
        %v1682 = vsub.f32 %v247, %v1599
        %v1683 = vsub.f32 %v248, %v1601
        %v1684 = vsub.f32 %v249, %v1603
        %v1685 = vsub.f32 %v250, %v1605
        %v1686 = vsub.f32 %v267, %v1607
        %v1687 = vsub.f32 %v268, %v1609
        %v1688 = vsub.f32 %v269, %v1611
        %v1689 = vsub.f32 %v270, %v1613
        %v1690 = vsub.f32 %v271, %v1615
        %v1691 = vsub.f32 %v272, %v1617
        %v1692 = vsub.f32 %v273, %v1619
        %v1693 = vsub.f32 %v274, %v1621
        %v1694 = vsub.f32 %v275, %v1623
        %v1695 = vsub.f32 %v276, %v1625
        %v1696 = vsub.f32 %v277, %v1627
        %v1697 = vsub.f32 %v278, %v1629
        %v1698 = vsub.f32 %v279, %v1631
        %v1699 = vsub.f32 %v280, %v1633
        %v1700 = vsub.f32 %v281, %v1635
        %v1701 = vsub.f32 %v282, %v1637
        %v1702 = vmul.f32 %v1670, %v1670
        %v1703 = vmul.f32 %v1671, %v1671
        %v1704 = vmul.f32 %v1672, %v1672
        %v1705 = vmul.f32 %v1673, %v1673
        %v1706 = vmul.f32 %v1674, %v1674
        %v1707 = vmul.f32 %v1675, %v1675
        %v1708 = vmul.f32 %v1676, %v1676
        %v1709 = vmul.f32 %v1677, %v1677
        %v1710 = vmul.f32 %v1678, %v1678
        %v1711 = vmul.f32 %v1679, %v1679
        %v1712 = vmul.f32 %v1680, %v1680
        %v1713 = vmul.f32 %v1681, %v1681
        %v1714 = vmul.f32 %v1682, %v1682
        %v1715 = vmul.f32 %v1683, %v1683
        %v1716 = vmul.f32 %v1684, %v1684
        %v1717 = vmul.f32 %v1685, %v1685
        %v1718 = vmul.f32 %v1686, %v1686
        %v1719 = vmul.f32 %v1687, %v1687
        %v1720 = vmul.f32 %v1688, %v1688
        %v1721 = vmul.f32 %v1689, %v1689
        %v1722 = vmul.f32 %v1690, %v1690
        %v1723 = vmul.f32 %v1691, %v1691
        %v1724 = vmul.f32 %v1692, %v1692
        %v1725 = vmul.f32 %v1693, %v1693
        %v1726 = vmul.f32 %v1694, %v1694
        %v1727 = vmul.f32 %v1695, %v1695
        %v1728 = vmul.f32 %v1696, %v1696
        %v1729 = vmul.f32 %v1697, %v1697
        %v1730 = vmul.f32 %v1698, %v1698
        %v1731 = vmul.f32 %v1699, %v1699
        %v1732 = vmul.f32 %v1700, %v1700
        %v1733 = vmul.f32 %v1701, %v1701
        %v1734 = vmul.f32 %v1702, %v1510
        %v1735 = vmul.f32 %v1703, %v1511
        %v1736 = vmul.f32 %v1704, %v1512
        %v1737 = vmul.f32 %v1705, %v1513
        %v1738 = vmul.f32 %v1706, %v1514
        %v1739 = vmul.f32 %v1707, %v1515
        %v1740 = vmul.f32 %v1708, %v1516
        %v1741 = vmul.f32 %v1709, %v1517
        %v1742 = vmul.f32 %v1710, %v1518
        %v1743 = vmul.f32 %v1711, %v1519
        %v1744 = vmul.f32 %v1712, %v1520
        %v1745 = vmul.f32 %v1713, %v1521
        %v1746 = vmul.f32 %v1714, %v1522
        %v1747 = vmul.f32 %v1715, %v1523
        %v1748 = vmul.f32 %v1716, %v1524
        %v1749 = vmul.f32 %v1717, %v1525
        %v1750 = vmul.f32 %v1718, %v1526
        %v1751 = vmul.f32 %v1719, %v1527
        %v1752 = vmul.f32 %v1720, %v1528
        %v1753 = vmul.f32 %v1721, %v1529
        %v1754 = vmul.f32 %v1722, %v1530
        %v1755 = vmul.f32 %v1723, %v1531
        %v1756 = vmul.f32 %v1724, %v1532
        %v1757 = vmul.f32 %v1725, %v1533
        %v1758 = vmul.f32 %v1726, %v1534
        %v1759 = vmul.f32 %v1727, %v1535
        %v1760 = vmul.f32 %v1728, %v1536
        %v1761 = vmul.f32 %v1729, %v1537
        %v1762 = vmul.f32 %v1730, %v1538
        %v1763 = vmul.f32 %v1731, %v1539
        %v1764 = vmul.f32 %v1732, %v1540
        %v1765 = vmul.f32 %v1733, %v1541
        %1798 = vrot.lane.b32.xlu0 %v1734, 123
        %v1799 = vpop.permute.xlu0 %1798
        %1800 = vrot.lane.b32.xlu0 %v1735, 123
        %v1801 = vpop.permute.xlu0 %1800
        %1802 = vrot.lane.b32.xlu0 %v1736, 123
        %v1803 = vpop.permute.xlu0 %1802
        %1804 = vrot.lane.b32.xlu0 %v1737, 123
        %v1805 = vpop.permute.xlu0 %1804
        %1806 = vrot.lane.b32.xlu0 %v1738, 123
        %v1807 = vpop.permute.xlu0 %1806
        %1808 = vrot.lane.b32.xlu0 %v1739, 123
        %v1809 = vpop.permute.xlu0 %1808
        %1810 = vrot.lane.b32.xlu0 %v1740, 123
        %v1811 = vpop.permute.xlu0 %1810
        %1812 = vrot.lane.b32.xlu0 %v1741, 123
        %v1813 = vpop.permute.xlu0 %1812
        %1814 = vrot.lane.b32.xlu0 %v1742, 123
        %v1815 = vpop.permute.xlu0 %1814
        %1816 = vrot.lane.b32.xlu0 %v1743, 123
        %v1817 = vpop.permute.xlu0 %1816
        %1818 = vrot.lane.b32.xlu0 %v1744, 123
        %v1819 = vpop.permute.xlu0 %1818
        %1820 = vrot.lane.b32.xlu0 %v1745, 123
        %v1821 = vpop.permute.xlu0 %1820
        %1822 = vrot.lane.b32.xlu0 %v1746, 123
        %v1823 = vpop.permute.xlu0 %1822
        %1824 = vrot.lane.b32.xlu0 %v1747, 123
        %v1825 = vpop.permute.xlu0 %1824
        %1826 = vrot.lane.b32.xlu0 %v1748, 123
        %v1827 = vpop.permute.xlu0 %1826
        %1828 = vrot.lane.b32.xlu0 %v1749, 123
        %v1829 = vpop.permute.xlu0 %1828
        %1830 = vrot.lane.b32.xlu0 %v1750, 123
        %v1831 = vpop.permute.xlu0 %1830
        %1832 = vrot.lane.b32.xlu0 %v1751, 123
        %v1833 = vpop.permute.xlu0 %1832
        %1834 = vrot.lane.b32.xlu0 %v1752, 123
        %v1835 = vpop.permute.xlu0 %1834
        %1836 = vrot.lane.b32.xlu0 %v1753, 123
        %v1837 = vpop.permute.xlu0 %1836
        %1838 = vrot.lane.b32.xlu0 %v1754, 123
        %v1839 = vpop.permute.xlu0 %1838
        %1840 = vrot.lane.b32.xlu0 %v1755, 123
        %v1841 = vpop.permute.xlu0 %1840
        %1842 = vrot.lane.b32.xlu0 %v1756, 123
        %v1843 = vpop.permute.xlu0 %1842
        %1844 = vrot.lane.b32.xlu0 %v1757, 123
        %v1845 = vpop.permute.xlu0 %1844
        %1846 = vrot.lane.b32.xlu0 %v1758, 123
        %v1847 = vpop.permute.xlu0 %1846
        %1848 = vrot.lane.b32.xlu0 %v1759, 123
        %v1849 = vpop.permute.xlu0 %1848
        %1850 = vrot.lane.b32.xlu0 %v1760, 123
        %v1851 = vpop.permute.xlu0 %1850
        %1852 = vrot.lane.b32.xlu0 %v1761, 123
        %v1853 = vpop.permute.xlu0 %1852
        %1854 = vrot.lane.b32.xlu0 %v1762, 123
        %v1855 = vpop.permute.xlu0 %1854
        %1856 = vrot.lane.b32.xlu0 %v1763, 123
        %v1857 = vpop.permute.xlu0 %1856
        %1858 = vrot.lane.b32.xlu0 %v1764, 123
        %v1859 = vpop.permute.xlu0 %1858
        %1860 = vrot.lane.b32.xlu0 %v1765, 123
        %v1861 = vpop.permute.xlu0 %1860
        %vm1894 = vcmask 7168
        %v1895 = vsel %vm1894, %v1799, 0.0
        %v1896 = vsel %vm1894, %v1801, 0.0
        %v1897 = vadd.f32 %v1895, %v1896
        %v1898 = vsel %vm1894, %v1803, 0.0
        %v1899 = vadd.f32 %v1897, %v1898
        %v1900 = vsel %vm1894, %v1805, 0.0
        %v1901 = vadd.f32 %v1899, %v1900
        %v1902 = vsel %vm1894, %v1807, 0.0
        %v1903 = vadd.f32 %v1901, %v1902
        %v1904 = vsel %vm1894, %v1809, 0.0
        %v1905 = vadd.f32 %v1903, %v1904
        %v1906 = vsel %vm1894, %v1811, 0.0
        %v1907 = vadd.f32 %v1905, %v1906
        %v1908 = vsel %vm1894, %v1813, 0.0
        %v1909 = vadd.f32 %v1907, %v1908
        %v1910 = vsel %vm1894, %v1815, 0.0
        %v1911 = vadd.f32 %v1909, %v1910
        %v1912 = vsel %vm1894, %v1817, 0.0
        %v1913 = vadd.f32 %v1911, %v1912
        %v1914 = vsel %vm1894, %v1819, 0.0
        %v1915 = vadd.f32 %v1913, %v1914
        %v1916 = vsel %vm1894, %v1821, 0.0
        %v1917 = vadd.f32 %v1915, %v1916
        %v1918 = vsel %vm1894, %v1823, 0.0
        %v1919 = vadd.f32 %v1917, %v1918
        %v1920 = vsel %vm1894, %v1825, 0.0
        %v1921 = vadd.f32 %v1919, %v1920
        %v1922 = vsel %vm1894, %v1827, 0.0
        %v1923 = vadd.f32 %v1921, %v1922
        %v1924 = vsel %vm1894, %v1829, 0.0
        %v1925 = vadd.f32 %v1923, %v1924
        %v1926 = vsel %vm1894, %v1831, 0.0
        %v1927 = vadd.f32 %v1925, %v1926
        %v1928 = vsel %vm1894, %v1833, 0.0
        %v1929 = vadd.f32 %v1927, %v1928
        %v1930 = vsel %vm1894, %v1835, 0.0
        %v1931 = vadd.f32 %v1929, %v1930
        %v1932 = vsel %vm1894, %v1837, 0.0
        %v1933 = vadd.f32 %v1931, %v1932
        %v1934 = vsel %vm1894, %v1839, 0.0
        %v1935 = vadd.f32 %v1933, %v1934
        %v1936 = vsel %vm1894, %v1841, 0.0
        %v1937 = vadd.f32 %v1935, %v1936
        %v1938 = vsel %vm1894, %v1843, 0.0
        %v1939 = vadd.f32 %v1937, %v1938
        %v1940 = vsel %vm1894, %v1845, 0.0
        %v1941 = vadd.f32 %v1939, %v1940
        %v1942 = vsel %vm1894, %v1847, 0.0
        %v1943 = vadd.f32 %v1941, %v1942
        %v1944 = vsel %vm1894, %v1849, 0.0
        %v1945 = vadd.f32 %v1943, %v1944
        %v1946 = vsel %vm1894, %v1851, 0.0
        %v1947 = vadd.f32 %v1945, %v1946
        %v1948 = vsel %vm1894, %v1853, 0.0
        %v1949 = vadd.f32 %v1947, %v1948
        %v1950 = vsel %vm1894, %v1855, 0.0
        %v1951 = vadd.f32 %v1949, %v1950
        %v1952 = vsel %vm1894, %v1857, 0.0
        %v1953 = vadd.f32 %v1951, %v1952
        %v1954 = vsel %vm1894, %v1859, 0.0
        %v1955 = vadd.f32 %v1953, %v1954
        %v1956 = vsel %vm1894, %v1861, 0.0
        %v1957 = vadd.f32 %v1955, %v1956
        %1958 = vadd.xlane.f32.xlu0 %v1957
        %v1959 = vpop.xlane.xlu0 %1958
        %v1960 = vrot.slane %v1959, 4
        %v1961 = vadd.f32 %v1959, %v1960
        %v1962 = vrot.slane %v1961, 2
        %v1963 = vadd.f32 %v1961, %v1962
        %v1964 = vrot.slane %v1963, 1
        %v1965 = vadd.f32 %v1963, %v1964
        %s1966 = vtos %v1965
        %p1967 = scmp.eq.s32.totalorder %s24, 0
        // Predicated region
        $region37: #{tpu_custom_call.1} parent=27 // pred_check
          %p1968 = pneg %p1967
        $region38: #{tpu_custom_call.1} parent=27 // pred_check_branch
          %1970 = sbr.rel (%p1968) target = $region40
        $region39: #{tpu_custom_call.1} parent=27 // pred_region
          %vm1971 = vcmask 0
          %1972 = vst.msk [vmem:[%s216] sm:$0x1] %vm1971, 0.0
        $region40: #{tpu_custom_call.1} parent=27 // pred_fallthru
          _
        %v1973 = vld [vmem:[%s216] sm:$0x1]
        %v1974 = vstv %s1966
        %v1975 = vadd.f32 %v1973, %v1974
        %vm1976 = vcmask 0
        %1977 = vst.msk [vmem:[%s216] sm:$0x1] %vm1976, %v1975
        %p1978 = scmp.lt.s32.totalorder %s23, 1
        %s1979 = scalar_select %p1978, %s23, 1
        %s1980 = scalar_lea.vmem %s2, %s1979
        // Predicated region
        $region41: #{tpu_custom_call.1} parent=27 // pred_check
          %p1981 = pneg %p103
        $region42: #{tpu_custom_call.1} parent=27 // pred_check_branch
          %1983 = sbr.rel (%p1981) target = $region44
        $region43: #{tpu_custom_call.1} parent=27 // pred_region
          _
        $region44: #{tpu_custom_call.1} parent=27 // pred_fallthru
          _
      $region28: #{tpu_custom_call.1} parent=5 // pred_fallthru
        _
      %p1984 = scmp.le.s32.totalorder 2, %s14
      // Predicated region
      $region45: #{tpu_custom_call.1} parent=5 // pred_check
        %p1985 = pneg %p1984
      $region46: #{tpu_custom_call.1} parent=5 // pred_check_branch
        %1987 = sbr.rel (%p1985) target = $region48
      $region47: #{tpu_custom_call.1} parent=5 // pred_region
        %s1988 = ssub.s32 %s14, 2
        // Predicated region
        $region49: #{tpu_custom_call.1} parent=47 // pred_check
          %p1989 = pneg %p109
        $region50: #{tpu_custom_call.1} parent=47 // pred_check_branch
          %1991 = sbr.rel (%p1989) target = $region52
        $region51: #{tpu_custom_call.1} parent=47 // pred_region
          %p1992 = scmp.lt.s32.totalorder %s25, 1
          %s1993 = scalar_select %p1992, %s25, 1
          %s1994 = scalar_lea.vmem %s2, %s1993
        $region52: #{tpu_custom_call.1} parent=47 // pred_fallthru
          _
      $region48: #{tpu_custom_call.1} parent=5 // pred_fallthru
        _
    $region6: #{tpu_custom_call.1} parent=1 // loop_footer
      %s18 = sadd.s32 1, %s14
    $region7: #{tpu_custom_call.1} parent=1 // loop_footer_branch
      %13 = sbr.rel target = $region3
    $region8: #{tpu_custom_call.1} parent=1 // loop_exit
      _
    %1995 = vsyncpa [#allocation3], 1
    %s1996 = scalar_lea.sflag [#allocation3], 1
    %1997 = vsyncpa %s1996, 1
    %1998 = vsyncpa [#allocation5], 1
    %s1999 = scalar_lea.sflag [#allocation5], 1
    %2000 = vsyncpa %s1999, 1

</llo_original>
